<compile_context>
chip_gen: v7x
topology: tpu7x:2x2x1
jax: 0.10.0
libtpu: 0.0.40
codegen_flags: <defaults>
</compile_context>

<pallas_src>
import functools

import jax
import jax.numpy as jnp
from jax import lax
from jax.experimental import pallas as pl
from jax.experimental.pallas import tpu as pltpu


def _round_up(v, m):
    return (v + m - 1) // m * m


# ---------------------------------------------------------------------------
# Kernel 1: fused GraphAttentionLayer (per batch element)
# ---------------------------------------------------------------------------
def _gat_kernel(h_ref, adj_ref, w_ref, a1_ref, a2_ref, o_ref, *, alpha):
    # h_ref:   (1, Np, Fip)   padded node features
    # adj_ref: (1, Np, Np)    padded 0/1 adjacency (padded rows/cols are 0)
    # w_ref:   (Fip, Fop)     padded weight
    # a1/a2:   (1, Fop)       first / second half of attention vector `a`
    # o_ref:   (1, Np, Fop)
    h = h_ref[0]
    adj = adj_ref[0]

    wh = jnp.dot(h, w_ref[...], preferred_element_type=jnp.float32)      # (Np,Fop)

    # e[i, j] = LeakyReLU( wh[i]·a1 + wh[j]·a2 )
    wh1 = jnp.sum(wh * a1_ref[...], axis=-1, keepdims=True)              # (Np,1)
    wh2 = lax.dot_general(a2_ref[...], wh, (((1,), (1,)), ((), ())),
                          preferred_element_type=jnp.float32)            # (1,Np)
    e = wh1 + wh2                                                        # (Np,Np)
    e = jnp.where(e > 0, e, alpha * e)                                   # LeakyReLU

    # mask non-edges (and padded columns, adj==0) exactly like the module
    att = jnp.where(adj > 0, e, jnp.float32(-9e15))

    # row softmax (max-subtracted, exact division)
    att_max = jnp.max(att, axis=-1, keepdims=True)
    p = jnp.exp(att - att_max)
    att = p / jnp.sum(p, axis=-1, keepdims=True)

    hp = jnp.dot(att, wh, preferred_element_type=jnp.float32)            # (Np,Fop)
    # ELU epilogue (head layer: concat=True; out layer: GAT applies ELU after)
    o_ref[0] = jnp.where(hp > 0, hp, jnp.exp(hp) - 1.0)


def _gat_layer(h, adj, w_mat, a_vec, alpha):
    """h: (B,N,Fin), adj: (B,N,N) 0/1, w_mat: (Fin,Fout), a_vec: (2*Fout,1)."""
    B, N, Fin = h.shape
    Fout = w_mat.shape[1]
    Np = _round_up(N, 128)
    Fip = _round_up(Fin, 128)
    Fop = _round_up(Fout, 128)

    hp = jnp.zeros((B, Np, Fip), jnp.float32).at[:, :N, :Fin].set(h)
    adjp = jnp.zeros((B, Np, Np), jnp.float32).at[:, :N, :N].set(adj)
    wp = jnp.zeros((Fip, Fop), jnp.float32).at[:Fin, :Fout].set(w_mat)
    a1 = jnp.zeros((1, Fop), jnp.float32).at[0, :Fout].set(a_vec[:Fout, 0])
    a2 = jnp.zeros((1, Fop), jnp.float32).at[0, :Fout].set(a_vec[Fout:, 0])

    out = pl.pallas_call(
        functools.partial(_gat_kernel, alpha=alpha),
        out_shape=jax.ShapeDtypeStruct((B, Np, Fop), jnp.float32),
        grid_spec=pltpu.PrefetchScalarGridSpec(
            num_scalar_prefetch=0,
            grid=(B,),
            in_specs=[
                pl.BlockSpec((1, Np, Fip), lambda b: (b, 0, 0)),
                pl.BlockSpec((1, Np, Np), lambda b: (b, 0, 0)),
                pl.BlockSpec((Fip, Fop), lambda b: (0, 0)),
                pl.BlockSpec((1, Fop), lambda b: (0, 0)),
                pl.BlockSpec((1, Fop), lambda b: (0, 0)),
            ],
            out_specs=pl.BlockSpec((1, Np, Fop), lambda b: (b, 0, 0)),
        ),
        compiler_params=pltpu.CompilerParams(
            dimension_semantics=("parallel",)),
    )(hp, adjp, wp, a1, a2)
    return out[:, :N, :Fout]


# ---------------------------------------------------------------------------
# Kernel 2: generic matmul + bias (+ optional ReLU) — used for conv / deconv
# ---------------------------------------------------------------------------
def _mm_bias_kernel(x_ref, w_ref, b_ref, o_ref, *, relu):
    y = jnp.dot(x_ref[...], w_ref[...],
                preferred_element_type=jnp.float32) + b_ref[...]
    if relu:
        y = jnp.maximum(y, 0.0)
    o_ref[...] = y


def _matmul_bias_act(x2d, w2d, b1d, *, relu):
    M, K = x2d.shape
    _, N = w2d.shape
    Mp = _round_up(M, 8)
    Kp = _round_up(K, 128)
    Np = _round_up(N, 128)
    xp = jnp.zeros((Mp, Kp), jnp.float32).at[:M, :K].set(x2d)
    wp = jnp.zeros((Kp, Np), jnp.float32).at[:K, :N].set(w2d)
    bp = jnp.zeros((1, Np), jnp.float32).at[0, :N].set(b1d)

    out = pl.pallas_call(
        functools.partial(_mm_bias_kernel, relu=relu),
        out_shape=jax.ShapeDtypeStruct((Mp, Np), jnp.float32),
        grid_spec=pltpu.PrefetchScalarGridSpec(
            num_scalar_prefetch=0,
            grid=(1,),
            in_specs=[
                pl.BlockSpec((Mp, Kp), lambda i: (0, 0)),
                pl.BlockSpec((Kp, Np), lambda i: (0, 0)),
                pl.BlockSpec((1, Np), lambda i: (0, 0)),
            ],
            out_specs=pl.BlockSpec((Mp, Np), lambda i: (0, 0)),
        ),
    )(xp, wp, bp)
    return out[:M, :N]


# ---------------------------------------------------------------------------
# Kernel 3: fused bilinear(align_corners=True) resize + residual + ReLU
# ---------------------------------------------------------------------------
def _resize_add_relu_kernel(d_ref, rh_ref, rwt_ref, x_ref, o_ref):
    # d_ref: (1,C,Hd,Wd)  rh_ref: (H,Hd)  rwt_ref: (Wd,W)  x_ref/o_ref: (1,C,H,W)
    C = d_ref.shape[1]
    rh = rh_ref[...]
    rwt = rwt_ref[...]
    for c in range(C):                       # small static channel count
        t = jnp.dot(d_ref[0, c], rwt, preferred_element_type=jnp.float32)
        y = jnp.dot(rh, t, preferred_element_type=jnp.float32)
        o_ref[0, c] = jnp.maximum(y + x_ref[0, c], 0.0)


def _resize_add_relu(d, rh, rwt, x):
    B, C, Hd, Wd = d.shape
    _, _, H, W = x.shape
    return pl.pallas_call(
        _resize_add_relu_kernel,
        out_shape=jax.ShapeDtypeStruct((B, C, H, W), jnp.float32),
        grid_spec=pltpu.PrefetchScalarGridSpec(
            num_scalar_prefetch=0,
            grid=(B,),
            in_specs=[
                pl.BlockSpec((1, C, Hd, Wd), lambda b: (b, 0, 0, 0)),
                pl.BlockSpec((H, Hd), lambda b: (0, 0)),
                pl.BlockSpec((Wd, W), lambda b: (0, 0)),
                pl.BlockSpec((1, C, H, W), lambda b: (b, 0, 0, 0)),
            ],
            out_specs=pl.BlockSpec((1, C, H, W), lambda b: (b, 0, 0, 0)),
        ),
        compiler_params=pltpu.CompilerParams(
            dimension_semantics=("parallel",)),
    )(d, rh, rwt, x)


def _interp_matrix(out_size, in_size):
    """Bilinear (align_corners=True) interpolation coefficients (out, in)."""
    scale = 0.0 if out_size == 1 else (in_size - 1) / (out_size - 1)
    src = jnp.arange(out_size, dtype=jnp.float32) * jnp.float32(scale)
    i0 = jnp.clip(jnp.floor(src).astype(jnp.int32), 0, in_size - 1)
    i1 = jnp.clip(i0 + 1, 0, in_size - 1)
    w1 = src - i0.astype(jnp.float32)
    return (jax.nn.one_hot(i0, in_size, dtype=jnp.float32) * (1.0 - w1)[:, None]
            + jax.nn.one_hot(i1, in_size, dtype=jnp.float32) * w1[:, None])


# ---------------------------------------------------------------------------
# Full GAT forward
# ---------------------------------------------------------------------------
@functools.partial(jax.jit, static_argnames=("top_k", "token", "alpha"))
def gat_forward(x, params, *, top_k=4, token=3, alpha=0.2):
    # TODO(synk): ConvModule defaults assumed (Conv2d(k=token, s=token, p=0,
    # bias=True) + ReLU, no norm); deconv is ConvTranspose2d(k=token, s=token).
    x = x.astype(jnp.float32)
    B, Cin, H, W = x.shape
    conv_w = params["conv_w"].astype(jnp.float32)
    conv_b = params["conv_b"].astype(jnp.float32)
    hidden = conv_w.shape[0]
    Ho = (H - token) // token + 1
    Wo = (W - token) // token + 1
    N = Ho * Wo

    # --- ConvModule as one im2col matmul (stride==kernel -> disjoint patches)
    xc = x[:, :, :Ho * token, :Wo * token]
    patches = xc.reshape(B, Cin, Ho, token, Wo, token)
    patches = patches.transpose(0, 2, 4, 1, 3, 5).reshape(B * N, Cin * token * token)
    w_conv = conv_w.reshape(hidden, Cin * token * token).T
    h_nodes = _matmul_bias_act(patches, w_conv, conv_b, relu=True)
    h_nodes = h_nodes.reshape(B, N, hidden)

    # --- adjacency: k LARGEST pairwise distances (matches torch.topk default)
    # TODO(synk): cdist + top-k + scatter kept as JAX glue (no clean in-kernel
    # top-k on TPU Pallas); only the 0/1 mask feeds the Pallas attention kernel.
    diff = h_nodes[:, :, None, :] - h_nodes[:, None, :, :]
    dist = jnp.sqrt(jnp.sum(diff * diff, axis=-1))
    idx = lax.top_k(dist, top_k)[1]
    adj = (jnp.sum(jax.nn.one_hot(idx, N, dtype=jnp.float32), axis=2) > 0
           ).astype(jnp.float32)

    # --- attention head (concat=True -> ELU) then output layer (+ outer ELU)
    h1 = _gat_layer(h_nodes, adj, params["att_W"].astype(jnp.float32),
                    params["att_a"].astype(jnp.float32), alpha)
    h2 = _gat_layer(h1, adj, params["out_W"].astype(jnp.float32),
                    params["out_a"].astype(jnp.float32), alpha)

    # --- ConvTranspose2d(k=token, s=token) as one matmul + spatial unfold
    dw = params["deconv_w"].astype(jnp.float32)       # (Fin, Fout, k, k)
    db = params["deconv_b"].astype(jnp.float32)
    fd_in, fd_out = dw.shape[0], dw.shape[1]
    w_dec = dw.reshape(fd_in, fd_out * token * token)
    b_dec = jnp.repeat(db, token * token)
    d = _matmul_bias_act(h2.reshape(B * N, fd_in), w_dec, b_dec, relu=False)
    d = d.reshape(B, Ho, Wo, fd_out, token, token)
    d = d.transpose(0, 3, 1, 4, 2, 5).reshape(B, fd_out, Ho * token, Wo * token)

    # --- fused bilinear resize (align_corners=True) + residual + ReLU
    rh = _interp_matrix(H, Ho * token)
    rwt = _interp_matrix(W, Wo * token).T
    return _resize_add_relu(d, rh, rwt, x)


# ---------------------------------------------------------------------------
# Pure-JAX reference (independent ops, HIGHEST precision)
# ---------------------------------------------------------------------------
def _elu(v):
    return jnp.where(v > 0, v, jnp.exp(v) - 1.0)


def _gat_layer_ref(h, adj, w_mat, a_vec, alpha, concat):
    prec = lax.Precision.HIGHEST
    F = w_mat.shape[1]
    wh = jnp.matmul(h, w_mat, precision=prec)
    wh1 = jnp.matmul(wh, a_vec[:F], precision=prec)
    wh2 = jnp.matmul(wh, a_vec[F:], precision=prec)
    e = wh1 + jnp.swapaxes(wh2, 1, 2)
    e = jnp.where(e > 0, e, alpha * e)
    att = jnp.where(adj > 0, e, jnp.float32(-9e15))
    att = jax.nn.softmax(att, axis=-1)
    hp = jnp.matmul(att, wh, precision=prec)
    return _elu(hp) if concat else hp


def _bilinear_ref(img, H, W):
    _, _, Hi, Wi = img.shape
    sy = 0.0 if H == 1 else (Hi - 1) / (H - 1)
    sx = 0.0 if W == 1 else (Wi - 1) / (W - 1)
    ys = jnp.arange(H, dtype=jnp.float32) * sy
    xs = jnp.arange(W, dtype=jnp.float32) * sx
    y0 = jnp.clip(jnp.floor(ys).astype(jnp.int32), 0, Hi - 1)
    y1 = jnp.clip(y0 + 1, 0, Hi - 1)
    x0 = jnp.clip(jnp.floor(xs).astype(jnp.int32), 0, Wi - 1)
    x1 = jnp.clip(x0 + 1, 0, Wi - 1)
    wy = (ys - y0.astype(jnp.float32))[None, None, :, None]
    wx = (xs - x0.astype(jnp.float32))[None, None, None, :]
    g = lambda yy, xx: img[:, :, yy, :][:, :, :, xx]
    top = g(y0, x0) * (1 - wx) + g(y0, x1) * wx
    bot = g(y1, x0) * (1 - wx) + g(y1, x1) * wx
    return top * (1 - wy) + bot * wy


def _reference(x, params, *, top_k, token, alpha):
    prec = lax.Precision.HIGHEST
    x = x.astype(jnp.float32)
    h = lax.conv_general_dilated(
        x, params["conv_w"], window_strides=(token, token), padding="VALID",
        dimension_numbers=("NCHW", "OIHW", "NCHW"), precision=prec)
    h = jnp.maximum(h + params["conv_b"][None, :, None, None], 0.0)
    B, hid, Ho, Wo = h.shape
    N = Ho * Wo
    hn = h.reshape(B, hid, N).transpose(0, 2, 1)

    diff = hn[:, :, None, :] - hn[:, None, :, :]
    dist = jnp.sqrt(jnp.sum(diff * diff, axis=-1))
    idx = lax.top_k(dist, top_k)[1]
    adj = (jnp.sum(jax.nn.one_hot(idx, N, dtype=jnp.float32), axis=2) > 0
           ).astype(jnp.float32)

    h1 = _gat_layer_ref(hn, adj, params["att_W"], params["att_a"], alpha, True)
    h2 = _elu(_gat_layer_ref(h1, adj, params["out_W"], params["out_a"], alpha, False))

    fout = params["out_W"].shape[1]
    hmap = h2.reshape(B, Ho, Wo, fout).transpose(0, 3, 1, 2)

    dw, db = params["deconv_w"], params["deconv_b"]
    w_flip = jnp.flip(dw, axis=(2, 3)).transpose(1, 0, 2, 3)
    pad = token - 1
    d = lax.conv_general_dilated(
        hmap, w_flip, window_strides=(1, 1),
        padding=((pad, pad), (pad, pad)), lhs_dilation=(token, token),
        dimension_numbers=("NCHW", "OIHW", "NCHW"), precision=prec)
    d = d + db[None, :, None, None]

    up = _bilinear_ref(d, x.shape[2], x.shape[3])
    return jnp.maximum(up + x, 0.0)


if __name__ == "__main__":
    key = jax.random.PRNGKey(0)
    ks = jax.random.split(key, 9)

    B, C, H, W = 2, 4, 16, 16
    in_feature = C
    hidden = in_feature          # GAT: hidden_feature = in_feature
    out_feature = in_feature     # residual (h + x) requires matching channels
    token, top_k, alpha = 3, 4, 0.2

    x = jax.random.normal(ks[0], (B, C, H, W), jnp.float32)
    params = dict(
        conv_w=jax.random.normal(ks[1], (hidden, in_feature, token, token), jnp.float32) * 0.2,
        conv_b=jax.random.normal(ks[2], (hidden,), jnp.float32) * 0.1,
        att_W=jax.random.normal(ks[3], (hidden, hidden), jnp.float32) * 0.5,
        att_a=jax.random.normal(ks[4], (2 * hidden, 1), jnp.float32) * 0.5,
        out_W=jax.random.normal(ks[5], (hidden, out_feature), jnp.float32) * 0.5,
        out_a=jax.random.normal(ks[6], (2 * out_feature, 1), jnp.float32) * 0.5,
        deconv_w=jax.random.normal(ks[7], (out_feature, out_feature, token, token), jnp.float32) * 0.2,
        deconv_b=jax.random.normal(ks[8], (out_feature,), jnp.float32) * 0.1,
    )

    out = gat_forward(x, params, top_k=top_k, token=token, alpha=alpha)
    out = jax.block_until_ready(out)

    ref = _reference(x, params, top_k=top_k, token=token, alpha=alpha)
    assert out.shape == (B, C, H, W)
    err = float(jnp.max(jnp.abs(out - ref)))
    assert jnp.allclose(out, ref, atol=2e-3, rtol=2e-3), f"max abs err {err}"

    print("KERNEL_OK")
</pallas_src>

<mosaic_0001>
module attributes {stable_mosaic.version = 11 : i64} {
  func.func @_mm_bias_kernel(%arg0: i32, %arg1: memref<56x128xf32, #tpu.memory_space<vmem>>, %arg2: memref<128x128xf32, #tpu.memory_space<vmem>>, %arg3: memref<1x128xf32, #tpu.memory_space<vmem>>, %arg4: memref<56x128xf32, #tpu.memory_space<vmem>>) attributes {dimension_semantics = [#tpu.dimension_semantics<arbitrary>], iteration_bounds = array<i64: 1>, scalar_prefetch = 0 : i64, scratch_operands = 0 : i64, tpu.core_type = #tpu.core_type<tc>, window_params = [{pipeline_mode = #tpu.pipeline_mode<synchronous>, transform_indices = @transform_0, window_bounds = array<i64: 56, 128>}, {pipeline_mode = #tpu.pipeline_mode<synchronous>, transform_indices = @transform_1, window_bounds = array<i64: 128, 128>}, {pipeline_mode = #tpu.pipeline_mode<synchronous>, transform_indices = @transform_2, window_bounds = array<i64: 1, 128>}, {pipeline_mode = #tpu.pipeline_mode<synchronous>, transform_indices = @transform_3, window_bounds = array<i64: 56, 128>}]} {
    %c0 = arith.constant 0 : index
    %c0_0 = arith.constant 0 : index
    %0 = vector.load %arg1[%c0, %c0_0] : memref<56x128xf32, #tpu.memory_space<vmem>>, vector<56x128xf32>
    %c0_1 = arith.constant 0 : index
    %c0_2 = arith.constant 0 : index
    %1 = vector.load %arg2[%c0_1, %c0_2] : memref<128x128xf32, #tpu.memory_space<vmem>>, vector<128x128xf32>
    %cst = arith.constant dense<0.000000e+00> : vector<56x128xf32>
    %2 = tpu.matmul %0, %1, %cst {dimension_numbers = #tpu.dot_dimension_numbers<[1], [0], [0], [1], [0, 0, 1, 1], [], []>} : vector<56x128xf32>, vector<128x128xf32>, vector<56x128xf32> -> vector<56x128xf32>
    %c0_3 = arith.constant 0 : index
    %c0_4 = arith.constant 0 : index
    %3 = vector.load %arg3[%c0_3, %c0_4] : memref<1x128xf32, #tpu.memory_space<vmem>>, vector<1x128xf32>
    %4 = vector.broadcast %3 : vector<1x128xf32> to vector<56x128xf32>
    %5 = arith.addf %2, %4 : vector<56x128xf32>
    %cst_5 = arith.constant 0.000000e+00 : f32
    %6 = vector.broadcast %cst_5 : f32 to vector<56x128xf32>
    %7 = arith.maximumf %5, %6 : vector<56x128xf32>
    %c0_6 = arith.constant 0 : index
    %c0_7 = arith.constant 0 : index
    %8 = vector.load %arg4[%c0_6, %c0_7] : memref<56x128xf32, #tpu.memory_space<vmem>>, vector<56x128xf32>
    tpu.vector_store %arg4[%c0_6, %c0_7], %7 {strides = array<i32>} : memref<56x128xf32, #tpu.memory_space<vmem>>, vector<56x128xf32>,
    return
  }
  func.func @transform_0(%arg0: i32) -> (i32, i32) {
    %c0_i32 = arith.constant 0 : i32
    %c0_i32_0 = arith.constant 0 : i32
    %c0_i32_1 = arith.constant 0 : i32
    return %c0_i32, %c0_i32_0 : i32, i32
  }
  func.func @transform_1(%arg0: i32) -> (i32, i32) {
    %c0_i32 = arith.constant 0 : i32
    %c0_i32_0 = arith.constant 0 : i32
    %c0_i32_1 = arith.constant 0 : i32
    return %c0_i32, %c0_i32_0 : i32, i32
  }
  func.func @transform_2(%arg0: i32) -> (i32, i32) {
    %c0_i32 = arith.constant 0 : i32
    %c0_i32_0 = arith.constant 0 : i32
    %c0_i32_1 = arith.constant 0 : i32
    return %c0_i32, %c0_i32_0 : i32, i32
  }
  func.func @transform_3(%arg0: i32) -> (i32, i32) {
    %c0_i32 = arith.constant 0 : i32
    %c0_i32_0 = arith.constant 0 : i32
    %c0_i32_1 = arith.constant 0 : i32
    return %c0_i32, %c0_i32_0 : i32, i32
  }
}

module attributes {stable_mosaic.version = 11 : i64} {
  func.func @_gat_kernel(%arg0: i32, %arg1: memref<1x128x128xf32, #tpu.memory_space<vmem>>, %arg2: memref<1x128x128xf32, #tpu.memory_space<vmem>>, %arg3: memref<128x128xf32, #tpu.memory_space<vmem>>, %arg4: memref<1x128xf32, #tpu.memory_space<vmem>>, %arg5: memref<1x128xf32, #tpu.memory_space<vmem>>, %arg6: memref<1x128x128xf32, #tpu.memory_space<vmem>>) attributes {dimension_semantics = [#tpu.dimension_semantics<parallel>], iteration_bounds = array<i64: 2>, scalar_prefetch = 0 : i64, scratch_operands = 0 : i64, tpu.core_type = #tpu.core_type<tc>, window_params = [{transform_indices = @transform_0, window_bounds = array<i64: 1, 128, 128>}, {transform_indices = @transform_1, window_bounds = array<i64: 1, 128, 128>}, {pipeline_mode = #tpu.pipeline_mode<synchronous>, transform_indices = @transform_2, window_bounds = array<i64: 128, 128>}, {pipeline_mode = #tpu.pipeline_mode<synchronous>, transform_indices = @transform_3, window_bounds = array<i64: 1, 128>}, {pipeline_mode = #tpu.pipeline_mode<synchronous>, transform_indices = @transform_4, window_bounds = array<i64: 1, 128>}, {transform_indices = @transform_5, window_bounds = array<i64: 1, 128, 128>}]} {
    %c0 = arith.constant 0 : index
    %c0_0 = arith.constant 0 : index
    %c0_1 = arith.constant 0 : index
    %0 = vector.load %arg1[%c0, %c0_0, %c0_1] : memref<1x128x128xf32, #tpu.memory_space<vmem>>, vector<1x128x128xf32>
    %1 = vector.shape_cast %0 : vector<1x128x128xf32> to vector<128x128xf32>
    %c0_2 = arith.constant 0 : index
    %c0_3 = arith.constant 0 : index
    %c0_4 = arith.constant 0 : index
    %2 = vector.load %arg2[%c0_2, %c0_3, %c0_4] : memref<1x128x128xf32, #tpu.memory_space<vmem>>, vector<1x128x128xf32>
    %3 = vector.shape_cast %2 : vector<1x128x128xf32> to vector<128x128xf32>
    %c0_5 = arith.constant 0 : index
    %c0_6 = arith.constant 0 : index
    %4 = vector.load %arg3[%c0_5, %c0_6] : memref<128x128xf32, #tpu.memory_space<vmem>>, vector<128x128xf32>
    %cst = arith.constant dense<0.000000e+00> : vector<128x128xf32>
    %5 = tpu.matmul %1, %4, %cst {dimension_numbers = #tpu.dot_dimension_numbers<[1], [0], [0], [1], [0, 0, 1, 1], [], []>} : vector<128x128xf32>, vector<128x128xf32>, vector<128x128xf32> -> vector<128x128xf32>
    %c0_7 = arith.constant 0 : index
    %c0_8 = arith.constant 0 : index
    %6 = vector.load %arg4[%c0_7, %c0_8] : memref<1x128xf32, #tpu.memory_space<vmem>>, vector<1x128xf32>
    %7 = vector.broadcast %6 : vector<1x128xf32> to vector<128x128xf32>
    %8 = arith.mulf %5, %7 : vector<128x128xf32>
    %cst_9 = arith.constant dense<0.000000e+00> : vector<128xf32>
    %9 = vector.multi_reduction <add>, %8, %cst_9 [1] : vector<128x128xf32> to vector<128xf32>
    %10 = vector.shape_cast %9 : vector<128xf32> to vector<128x1xf32>
    %c0_10 = arith.constant 0 : index
    %c0_11 = arith.constant 0 : index
    %11 = vector.load %arg5[%c0_10, %c0_11] : memref<1x128xf32, #tpu.memory_space<vmem>>, vector<1x128xf32>
    %cst_12 = arith.constant dense<0.000000e+00> : vector<1x128xf32>
    %12 = tpu.matmul %11, %5, %cst_12 {dimension_numbers = #tpu.dot_dimension_numbers<[1], [1], [0], [0], [0, 0, 1, 0], [], []>} : vector<1x128xf32>, vector<128x128xf32>, vector<1x128xf32> -> vector<1x128xf32>
    %13 = vector.broadcast %10 : vector<128x1xf32> to vector<128x128xf32>
    %14 = vector.broadcast %12 : vector<1x128xf32> to vector<128x128xf32>
    %15 = arith.addf %13, %14 : vector<128x128xf32>
    %cst_13 = arith.constant 0.000000e+00 : f32
    %16 = vector.broadcast %cst_13 : f32 to vector<128x128xf32>
    %17 = arith.cmpf ogt, %15, %16 : vector<128x128xf32>
    %cst_14 = arith.constant 2.000000e-01 : f32
    %18 = vector.broadcast %cst_14 : f32 to vector<128x128xf32>
    %19 = arith.mulf %18, %15 : vector<128x128xf32>
    %20 = arith.select %17, %15, %19 : vector<128x128xi1>, vector<128x128xf32>
    %cst_15 = arith.constant 0.000000e+00 : f32
    %21 = vector.broadcast %cst_15 : f32 to vector<128x128xf32>
    %22 = arith.cmpf ogt, %3, %21 : vector<128x128xf32>
    %cst_16 = arith.constant -9.000000e+15 : f32
    %23 = vector.broadcast %cst_16 : f32 to vector<128x128xf32>
    %24 = arith.select %22, %20, %23 : vector<128x128xi1>, vector<128x128xf32>
    %cst_17 = arith.constant dense<0xFF800000> : vector<128xf32>
    %25 = vector.multi_reduction <maximumf>, %24, %cst_17 [1] : vector<128x128xf32> to vector<128xf32>
    %26 = vector.shape_cast %25 : vector<128xf32> to vector<128x1xf32>
    %27 = vector.broadcast %26 : vector<128x1xf32> to vector<128x128xf32>
    %28 = arith.subf %24, %27 : vector<128x128xf32>
    %29 = math.exp %28 : vector<128x128xf32>
    %cst_18 = arith.constant dense<0.000000e+00> : vector<128xf32>
    %30 = vector.multi_reduction <add>, %29, %cst_18 [1] : vector<128x128xf32> to vector<128xf32>
    %31 = vector.shape_cast %30 : vector<128xf32> to vector<128x1xf32>
    %32 = vector.broadcast %31 : vector<128x1xf32> to vector<128x128xf32>
    %33 = arith.divf %29, %32 : vector<128x128xf32>
    %cst_19 = arith.constant dense<0.000000e+00> : vector<128x128xf32>
    %34 = tpu.matmul %33, %5, %cst_19 {dimension_numbers = #tpu.dot_dimension_numbers<[1], [0], [0], [1], [0, 0, 1, 1], [], []>} : vector<128x128xf32>, vector<128x128xf32>, vector<128x128xf32> -> vector<128x128xf32>
    %cst_20 = arith.constant 0.000000e+00 : f32
    %35 = vector.broadcast %cst_20 : f32 to vector<128x128xf32>
    %36 = arith.cmpf ogt, %34, %35 : vector<128x128xf32>
    %37 = math.exp %34 : vector<128x128xf32>
    %cst_21 = arith.constant 1.000000e+00 : f32
    %38 = vector.broadcast %cst_21 : f32 to vector<128x128xf32>
    %39 = arith.subf %37, %38 : vector<128x128xf32>
    %40 = arith.select %36, %34, %39 : vector<128x128xi1>, vector<128x128xf32>
    %c0_22 = arith.constant 0 : index
    %c0_23 = arith.constant 0 : index
    %c0_24 = arith.constant 0 : index
    %41 = vector.load %arg6[%c0_22, %c0_23, %c0_24] : memref<1x128x128xf32, #tpu.memory_space<vmem>>, vector<1x128x128xf32>
    %42 = vector.shape_cast %41 : vector<1x128x128xf32> to vector<128x128xf32>
    %43 = vector.shape_cast %40 : vector<128x128xf32> to vector<1x128x128xf32>
    tpu.vector_store %arg6[%c0_22, %c0_23, %c0_24], %43 {strides = array<i32>} : memref<1x128x128xf32, #tpu.memory_space<vmem>>, vector<1x128x128xf32>,
    return
  }
  func.func @transform_0(%arg0: i32) -> (i32, i32, i32) {
    %c0_i32 = arith.constant 0 : i32
    %c0_i32_0 = arith.constant 0 : i32
    %c0_i32_1 = arith.constant 0 : i32
    return %arg0, %c0_i32, %c0_i32_0 : i32, i32, i32
  }
  func.func @transform_1(%arg0: i32) -> (i32, i32, i32) {
    %c0_i32 = arith.constant 0 : i32
    %c0_i32_0 = arith.constant 0 : i32
    %c0_i32_1 = arith.constant 0 : i32
    return %arg0, %c0_i32, %c0_i32_0 : i32, i32, i32
  }
  func.func @transform_2(%arg0: i32) -> (i32, i32) {
    %c0_i32 = arith.constant 0 : i32
    %c0_i32_0 = arith.constant 0 : i32
    %c0_i32_1 = arith.constant 0 : i32
    return %c0_i32, %c0_i32_0 : i32, i32
  }
  func.func @transform_3(%arg0: i32) -> (i32, i32) {
    %c0_i32 = arith.constant 0 : i32
    %c0_i32_0 = arith.constant 0 : i32
    %c0_i32_1 = arith.constant 0 : i32
    return %c0_i32, %c0_i32_0 : i32, i32
  }
  func.func @transform_4(%arg0: i32) -> (i32, i32) {
    %c0_i32 = arith.constant 0 : i32
    %c0_i32_0 = arith.constant 0 : i32
    %c0_i32_1 = arith.constant 0 : i32
    return %c0_i32, %c0_i32_0 : i32, i32
  }
  func.func @transform_5(%arg0: i32) -> (i32, i32, i32) {
    %c0_i32 = arith.constant 0 : i32
    %c0_i32_0 = arith.constant 0 : i32
    %c0_i32_1 = arith.constant 0 : i32
    return %arg0, %c0_i32, %c0_i32_0 : i32, i32, i32
  }
}

module attributes {stable_mosaic.version = 11 : i64} {
  func.func @_mm_bias_kernel(%arg0: i32, %arg1: memref<56x128xf32, #tpu.memory_space<vmem>>, %arg2: memref<128x128xf32, #tpu.memory_space<vmem>>, %arg3: memref<1x128xf32, #tpu.memory_space<vmem>>, %arg4: memref<56x128xf32, #tpu.memory_space<vmem>>) attributes {dimension_semantics = [#tpu.dimension_semantics<arbitrary>], iteration_bounds = array<i64: 1>, scalar_prefetch = 0 : i64, scratch_operands = 0 : i64, tpu.core_type = #tpu.core_type<tc>, window_params = [{pipeline_mode = #tpu.pipeline_mode<synchronous>, transform_indices = @transform_0, window_bounds = array<i64: 56, 128>}, {pipeline_mode = #tpu.pipeline_mode<synchronous>, transform_indices = @transform_1, window_bounds = array<i64: 128, 128>}, {pipeline_mode = #tpu.pipeline_mode<synchronous>, transform_indices = @transform_2, window_bounds = array<i64: 1, 128>}, {pipeline_mode = #tpu.pipeline_mode<synchronous>, transform_indices = @transform_3, window_bounds = array<i64: 56, 128>}]} {
    %c0 = arith.constant 0 : index
    %c0_0 = arith.constant 0 : index
    %0 = vector.load %arg1[%c0, %c0_0] : memref<56x128xf32, #tpu.memory_space<vmem>>, vector<56x128xf32>
    %c0_1 = arith.constant 0 : index
    %c0_2 = arith.constant 0 : index
    %1 = vector.load %arg2[%c0_1, %c0_2] : memref<128x128xf32, #tpu.memory_space<vmem>>, vector<128x128xf32>
    %cst = arith.constant dense<0.000000e+00> : vector<56x128xf32>
    %2 = tpu.matmul %0, %1, %cst {dimension_numbers = #tpu.dot_dimension_numbers<[1], [0], [0], [1], [0, 0, 1, 1], [], []>} : vector<56x128xf32>, vector<128x128xf32>, vector<56x128xf32> -> vector<56x128xf32>
    %c0_3 = arith.constant 0 : index
    %c0_4 = arith.constant 0 : index
    %3 = vector.load %arg3[%c0_3, %c0_4] : memref<1x128xf32, #tpu.memory_space<vmem>>, vector<1x128xf32>
    %4 = vector.broadcast %3 : vector<1x128xf32> to vector<56x128xf32>
    %5 = arith.addf %2, %4 : vector<56x128xf32>
    %c0_5 = arith.constant 0 : index
    %c0_6 = arith.constant 0 : index
    %6 = vector.load %arg4[%c0_5, %c0_6] : memref<56x128xf32, #tpu.memory_space<vmem>>, vector<56x128xf32>
    tpu.vector_store %arg4[%c0_5, %c0_6], %5 {strides = array<i32>} : memref<56x128xf32, #tpu.memory_space<vmem>>, vector<56x128xf32>,
    return
  }
  func.func @transform_0(%arg0: i32) -> (i32, i32) {
    %c0_i32 = arith.constant 0 : i32
    %c0_i32_0 = arith.constant 0 : i32
    %c0_i32_1 = arith.constant 0 : i32
    return %c0_i32, %c0_i32_0 : i32, i32
  }
  func.func @transform_1(%arg0: i32) -> (i32, i32) {
    %c0_i32 = arith.constant 0 : i32
    %c0_i32_0 = arith.constant 0 : i32
    %c0_i32_1 = arith.constant 0 : i32
    return %c0_i32, %c0_i32_0 : i32, i32
  }
  func.func @transform_2(%arg0: i32) -> (i32, i32) {
    %c0_i32 = arith.constant 0 : i32
    %c0_i32_0 = arith.constant 0 : i32
    %c0_i32_1 = arith.constant 0 : i32
    return %c0_i32, %c0_i32_0 : i32, i32
  }
  func.func @transform_3(%arg0: i32) -> (i32, i32) {
    %c0_i32 = arith.constant 0 : i32
    %c0_i32_0 = arith.constant 0 : i32
    %c0_i32_1 = arith.constant 0 : i32
    return %c0_i32, %c0_i32_0 : i32, i32
  }
}

module attributes {stable_mosaic.version = 11 : i64} {
  func.func @_resize_add_relu_kernel(%arg0: i32, %arg1: memref<1x4x15x15xf32, #tpu.memory_space<vmem>>, %arg2: memref<16x15xf32, #tpu.memory_space<vmem>>, %arg3: memref<15x16xf32, #tpu.memory_space<vmem>>, %arg4: memref<1x4x16x16xf32, #tpu.memory_space<vmem>>, %arg5: memref<1x4x16x16xf32, #tpu.memory_space<vmem>>) attributes {dimension_semantics = [#tpu.dimension_semantics<parallel>], iteration_bounds = array<i64: 2>, scalar_prefetch = 0 : i64, scratch_operands = 0 : i64, tpu.core_type = #tpu.core_type<tc>, window_params = [{transform_indices = @transform_0, window_bounds = array<i64: 1, 4, 15, 15>}, {pipeline_mode = #tpu.pipeline_mode<synchronous>, transform_indices = @transform_1, window_bounds = array<i64: 16, 15>}, {pipeline_mode = #tpu.pipeline_mode<synchronous>, transform_indices = @transform_2, window_bounds = array<i64: 15, 16>}, {transform_indices = @transform_3, window_bounds = array<i64: 1, 4, 16, 16>}, {transform_indices = @transform_4, window_bounds = array<i64: 1, 4, 16, 16>}]} {
    %c0 = arith.constant 0 : index
    %c0_0 = arith.constant 0 : index
    %0 = vector.load %arg2[%c0, %c0_0] : memref<16x15xf32, #tpu.memory_space<vmem>>, vector<16x15xf32>
    %c0_1 = arith.constant 0 : index
    %c0_2 = arith.constant 0 : index
    %1 = vector.load %arg3[%c0_1, %c0_2] : memref<15x16xf32, #tpu.memory_space<vmem>>, vector<15x16xf32>
    %c0_3 = arith.constant 0 : index
    %c0_4 = arith.constant 0 : index
    %c0_5 = arith.constant 0 : index
    %c0_6 = arith.constant 0 : index
    %2 = vector.load %arg1[%c0_3, %c0_4, %c0_5, %c0_6] : memref<1x4x15x15xf32, #tpu.memory_space<vmem>>, vector<1x1x15x15xf32>
    %3 = vector.shape_cast %2 : vector<1x1x15x15xf32> to vector<15x15xf32>
    %cst = arith.constant dense<0.000000e+00> : vector<15x16xf32>
    %4 = tpu.matmul %3, %1, %cst {dimension_numbers = #tpu.dot_dimension_numbers<[1], [0], [0], [1], [0, 0, 1, 1], [], []>} : vector<15x15xf32>, vector<15x16xf32>, vector<15x16xf32> -> vector<15x16xf32>
    %cst_7 = arith.constant dense<0.000000e+00> : vector<16x16xf32>
    %5 = tpu.matmul %0, %4, %cst_7 {dimension_numbers = #tpu.dot_dimension_numbers<[1], [0], [0], [1], [0, 0, 1, 1], [], []>} : vector<16x15xf32>, vector<15x16xf32>, vector<16x16xf32> -> vector<16x16xf32>
    %c0_8 = arith.constant 0 : index
    %c0_9 = arith.constant 0 : index
    %c0_10 = arith.constant 0 : index
    %c0_11 = arith.constant 0 : index
    %6 = vector.load %arg4[%c0_8, %c0_9, %c0_10, %c0_11] : memref<1x4x16x16xf32, #tpu.memory_space<vmem>>, vector<1x1x16x16xf32>
    %7 = vector.shape_cast %6 : vector<1x1x16x16xf32> to vector<16x16xf32>
    %8 = arith.addf %5, %7 : vector<16x16xf32>
    %cst_12 = arith.constant 0.000000e+00 : f32
    %9 = vector.broadcast %cst_12 : f32 to vector<16x16xf32>
    %10 = arith.maximumf %8, %9 : vector<16x16xf32>
    %c0_13 = arith.constant 0 : index
    %c0_14 = arith.constant 0 : index
    %c0_15 = arith.constant 0 : index
    %c0_16 = arith.constant 0 : index
    %11 = vector.load %arg5[%c0_13, %c0_14, %c0_15, %c0_16] : memref<1x4x16x16xf32, #tpu.memory_space<vmem>>, vector<1x1x16x16xf32>
    %12 = vector.shape_cast %11 : vector<1x1x16x16xf32> to vector<16x16xf32>
    %13 = vector.shape_cast %10 : vector<16x16xf32> to vector<1x1x16x16xf32>
    tpu.vector_store %arg5[%c0_13, %c0_14, %c0_15, %c0_16], %13 {strides = array<i32>} : memref<1x4x16x16xf32, #tpu.memory_space<vmem>>, vector<1x1x16x16xf32>,
    %c0_17 = arith.constant 0 : index
    %c1 = arith.constant 1 : index
    %c0_18 = arith.constant 0 : index
    %c0_19 = arith.constant 0 : index
    %14 = vector.load %arg1[%c0_17, %c1, %c0_18, %c0_19] : memref<1x4x15x15xf32, #tpu.memory_space<vmem>>, vector<1x1x15x15xf32>
    %15 = vector.shape_cast %14 : vector<1x1x15x15xf32> to vector<15x15xf32>
    %cst_20 = arith.constant dense<0.000000e+00> : vector<15x16xf32>
    %16 = tpu.matmul %15, %1, %cst_20 {dimension_numbers = #tpu.dot_dimension_numbers<[1], [0], [0], [1], [0, 0, 1, 1], [], []>} : vector<15x15xf32>, vector<15x16xf32>, vector<15x16xf32> -> vector<15x16xf32>
    %cst_21 = arith.constant dense<0.000000e+00> : vector<16x16xf32>
    %17 = tpu.matmul %0, %16, %cst_21 {dimension_numbers = #tpu.dot_dimension_numbers<[1], [0], [0], [1], [0, 0, 1, 1], [], []>} : vector<16x15xf32>, vector<15x16xf32>, vector<16x16xf32> -> vector<16x16xf32>
    %c0_22 = arith.constant 0 : index
    %c1_23 = arith.constant 1 : index
    %c0_24 = arith.constant 0 : index
    %c0_25 = arith.constant 0 : index
    %18 = vector.load %arg4[%c0_22, %c1_23, %c0_24, %c0_25] : memref<1x4x16x16xf32, #tpu.memory_space<vmem>>, vector<1x1x16x16xf32>
    %19 = vector.shape_cast %18 : vector<1x1x16x16xf32> to vector<16x16xf32>
    %20 = arith.addf %17, %19 : vector<16x16xf32>
    %cst_26 = arith.constant 0.000000e+00 : f32
    %21 = vector.broadcast %cst_26 : f32 to vector<16x16xf32>
    %22 = arith.maximumf %20, %21 : vector<16x16xf32>
    %c0_27 = arith.constant 0 : index
    %c1_28 = arith.constant 1 : index
    %c0_29 = arith.constant 0 : index
    %c0_30 = arith.constant 0 : index
    %23 = vector.load %arg5[%c0_27, %c1_28, %c0_29, %c0_30] : memref<1x4x16x16xf32, #tpu.memory_space<vmem>>, vector<1x1x16x16xf32>
    %24 = vector.shape_cast %23 : vector<1x1x16x16xf32> to vector<16x16xf32>
    %25 = vector.shape_cast %22 : vector<16x16xf32> to vector<1x1x16x16xf32>
    tpu.vector_store %arg5[%c0_27, %c1_28, %c0_29, %c0_30], %25 {strides = array<i32>} : memref<1x4x16x16xf32, #tpu.memory_space<vmem>>, vector<1x1x16x16xf32>,
    %c0_31 = arith.constant 0 : index
    %c2 = arith.constant 2 : index
    %c0_32 = arith.constant 0 : index
    %c0_33 = arith.constant 0 : index
    %26 = vector.load %arg1[%c0_31, %c2, %c0_32, %c0_33] : memref<1x4x15x15xf32, #tpu.memory_space<vmem>>, vector<1x1x15x15xf32>
    %27 = vector.shape_cast %26 : vector<1x1x15x15xf32> to vector<15x15xf32>
    %cst_34 = arith.constant dense<0.000000e+00> : vector<15x16xf32>
    %28 = tpu.matmul %27, %1, %cst_34 {dimension_numbers = #tpu.dot_dimension_numbers<[1], [0], [0], [1], [0, 0, 1, 1], [], []>} : vector<15x15xf32>, vector<15x16xf32>, vector<15x16xf32> -> vector<15x16xf32>
    %cst_35 = arith.constant dense<0.000000e+00> : vector<16x16xf32>
    %29 = tpu.matmul %0, %28, %cst_35 {dimension_numbers = #tpu.dot_dimension_numbers<[1], [0], [0], [1], [0, 0, 1, 1], [], []>} : vector<16x15xf32>, vector<15x16xf32>, vector<16x16xf32> -> vector<16x16xf32>
    %c0_36 = arith.constant 0 : index
    %c2_37 = arith.constant 2 : index
    %c0_38 = arith.constant 0 : index
    %c0_39 = arith.constant 0 : index
    %30 = vector.load %arg4[%c0_36, %c2_37, %c0_38, %c0_39] : memref<1x4x16x16xf32, #tpu.memory_space<vmem>>, vector<1x1x16x16xf32>
    %31 = vector.shape_cast %30 : vector<1x1x16x16xf32> to vector<16x16xf32>
    %32 = arith.addf %29, %31 : vector<16x16xf32>
    %cst_40 = arith.constant 0.000000e+00 : f32
    %33 = vector.broadcast %cst_40 : f32 to vector<16x16xf32>
    %34 = arith.maximumf %32, %33 : vector<16x16xf32>
    %c0_41 = arith.constant 0 : index
    %c2_42 = arith.constant 2 : index
    %c0_43 = arith.constant 0 : index
    %c0_44 = arith.constant 0 : index
    %35 = vector.load %arg5[%c0_41, %c2_42, %c0_43, %c0_44] : memref<1x4x16x16xf32, #tpu.memory_space<vmem>>, vector<1x1x16x16xf32>
    %36 = vector.shape_cast %35 : vector<1x1x16x16xf32> to vector<16x16xf32>
    %37 = vector.shape_cast %34 : vector<16x16xf32> to vector<1x1x16x16xf32>
    tpu.vector_store %arg5[%c0_41, %c2_42, %c0_43, %c0_44], %37 {strides = array<i32>} : memref<1x4x16x16xf32, #tpu.memory_space<vmem>>, vector<1x1x16x16xf32>,
    %c0_45 = arith.constant 0 : index
    %c3 = arith.constant 3 : index
    %c0_46 = arith.constant 0 : index
    %c0_47 = arith.constant 0 : index
    %38 = vector.load %arg1[%c0_45, %c3, %c0_46, %c0_47] : memref<1x4x15x15xf32, #tpu.memory_space<vmem>>, vector<1x1x15x15xf32>
    %39 = vector.shape_cast %38 : vector<1x1x15x15xf32> to vector<15x15xf32>
    %cst_48 = arith.constant dense<0.000000e+00> : vector<15x16xf32>
    %40 = tpu.matmul %39, %1, %cst_48 {dimension_numbers = #tpu.dot_dimension_numbers<[1], [0], [0], [1], [0, 0, 1, 1], [], []>} : vector<15x15xf32>, vector<15x16xf32>, vector<15x16xf32> -> vector<15x16xf32>
    %cst_49 = arith.constant dense<0.000000e+00> : vector<16x16xf32>
    %41 = tpu.matmul %0, %40, %cst_49 {dimension_numbers = #tpu.dot_dimension_numbers<[1], [0], [0], [1], [0, 0, 1, 1], [], []>} : vector<16x15xf32>, vector<15x16xf32>, vector<16x16xf32> -> vector<16x16xf32>
    %c0_50 = arith.constant 0 : index
    %c3_51 = arith.constant 3 : index
    %c0_52 = arith.constant 0 : index
    %c0_53 = arith.constant 0 : index
    %42 = vector.load %arg4[%c0_50, %c3_51, %c0_52, %c0_53] : memref<1x4x16x16xf32, #tpu.memory_space<vmem>>, vector<1x1x16x16xf32>
    %43 = vector.shape_cast %42 : vector<1x1x16x16xf32> to vector<16x16xf32>
    %44 = arith.addf %41, %43 : vector<16x16xf32>
    %cst_54 = arith.constant 0.000000e+00 : f32
    %45 = vector.broadcast %cst_54 : f32 to vector<16x16xf32>
    %46 = arith.maximumf %44, %45 : vector<16x16xf32>
    %c0_55 = arith.constant 0 : index
    %c3_56 = arith.constant 3 : index
    %c0_57 = arith.constant 0 : index
    %c0_58 = arith.constant 0 : index
    %47 = vector.load %arg5[%c0_55, %c3_56, %c0_57, %c0_58] : memref<1x4x16x16xf32, #tpu.memory_space<vmem>>, vector<1x1x16x16xf32>
    %48 = vector.shape_cast %47 : vector<1x1x16x16xf32> to vector<16x16xf32>
    %49 = vector.shape_cast %46 : vector<16x16xf32> to vector<1x1x16x16xf32>
    tpu.vector_store %arg5[%c0_55, %c3_56, %c0_57, %c0_58], %49 {strides = array<i32>} : memref<1x4x16x16xf32, #tpu.memory_space<vmem>>, vector<1x1x16x16xf32>,
    return
  }
  func.func @transform_0(%arg0: i32) -> (i32, i32, i32, i32) {
    %c0_i32 = arith.constant 0 : i32
    %c0_i32_0 = arith.constant 0 : i32
    %c0_i32_1 = arith.constant 0 : i32
    %c0_i32_2 = arith.constant 0 : i32
    return %arg0, %c0_i32, %c0_i32_0, %c0_i32_1 : i32, i32, i32, i32
  }
  func.func @transform_1(%arg0: i32) -> (i32, i32) {
    %c0_i32 = arith.constant 0 : i32
    %c0_i32_0 = arith.constant 0 : i32
    %c0_i32_1 = arith.constant 0 : i32
    return %c0_i32, %c0_i32_0 : i32, i32
  }
  func.func @transform_2(%arg0: i32) -> (i32, i32) {
    %c0_i32 = arith.constant 0 : i32
    %c0_i32_0 = arith.constant 0 : i32
    %c0_i32_1 = arith.constant 0 : i32
    return %c0_i32, %c0_i32_0 : i32, i32
  }
  func.func @transform_3(%arg0: i32) -> (i32, i32, i32, i32) {
    %c0_i32 = arith.constant 0 : i32
    %c0_i32_0 = arith.constant 0 : i32
    %c0_i32_1 = arith.constant 0 : i32
    %c0_i32_2 = arith.constant 0 : i32
    return %arg0, %c0_i32, %c0_i32_0, %c0_i32_1 : i32, i32, i32, i32
  }
  func.func @transform_4(%arg0: i32) -> (i32, i32, i32, i32) {
    %c0_i32 = arith.constant 0 : i32
    %c0_i32_0 = arith.constant 0 : i32
    %c0_i32_1 = arith.constant 0 : i32
    %c0_i32_2 = arith.constant 0 : i32
    return %arg0, %c0_i32, %c0_i32_0, %c0_i32_1 : i32, i32, i32, i32
  }
}

</mosaic_0001>

<llo_original>
// kernel: gat_forward.5
$region0: #{gat_forward.5}
  #allocation0 [shape = 'u32[]', space=smem, size = 0x4, offset = 0x4, fixed_abs, tag = 'smem constant byte address 0x4 - core index']
  #allocation1 [shape = 'u32[144,128]{1,0:T(1,128)}', space=vmem, size = 0x12000, scoped, tag = 'internal scratch']
  %s0 = inlined_call_operand.vmem [shape: f32[56,128], index: 0, kind: input, shape index: {}]
  %s1 = inlined_call_operand.vmem [shape: f32[128,128], index: 1, kind: input, shape index: {}]
  %s2 = inlined_call_operand.vmem [shape: f32[1,128], index: 2, kind: input, shape index: {}]
  %s3 = inlined_call_operand.vmem [shape: f32[56,128], index: 3, kind: output, shape index: {}]
  %s4 = sld [smem:[#allocation0]]
  $region22: #{gat_forward.5} parent=0
    _
  %s6 = ssub.s32 1, %s4
  %s7 = scalar_select 0, %s6, %s4
  // Predicated region
  $region2: #{gat_forward.5} parent=0 // pred_check
    _
  $region3: #{gat_forward.5} parent=0 // pred_check_branch
    %9 = sbr.rel (0) target = $region5
  $region4: #{gat_forward.5} parent=0 // pred_region
    _
  $region5: #{gat_forward.5} parent=0 // pred_fallthru
    _
  // Predicated region
  $region6: #{gat_forward.5} parent=0 // pred_check
    _
  $region7: #{gat_forward.5} parent=0 // pred_check_branch
    %11 = sbr.rel (0) target = $region9
  $region8: #{gat_forward.5} parent=0 // pred_region
    _
  $region9: #{gat_forward.5} parent=0 // pred_fallthru
    _
  // Predicated region
  $region10: #{gat_forward.5} parent=0 // pred_check
    _
  $region11: #{gat_forward.5} parent=0 // pred_check_branch
    %13 = sbr.rel (0) target = $region13
  $region12: #{gat_forward.5} parent=0 // pred_region
    _
  $region13: #{gat_forward.5} parent=0 // pred_fallthru
    _
  %v14 = vld [vmem:[%s0] sm:$0xff]
  %v15 = vld [vmem:[%s0 + $0x8] sm:$0xff]
  %v16 = vld [vmem:[%s0 + $0x10] sm:$0xff]
  %v17 = vld [vmem:[%s0 + $0x18] sm:$0xff]
  %v18 = vld [vmem:[%s0 + $0x20] sm:$0xff]
  %v19 = vld [vmem:[%s0 + $0x28] sm:$0xff]
  %v20 = vld [vmem:[%s0 + $0x30] sm:$0xff]
  %v21 = vld [vmem:[%s1] sm:$0xff]
  %v22 = vld [vmem:[%s1 + $0x8] sm:$0xff]
  %v23 = vld [vmem:[%s1 + $0x10] sm:$0xff]
  %v24 = vld [vmem:[%s1 + $0x18] sm:$0xff]
  %v25 = vld [vmem:[%s1 + $0x20] sm:$0xff]
  %v26 = vld [vmem:[%s1 + $0x28] sm:$0xff]
  %v27 = vld [vmem:[%s1 + $0x30] sm:$0xff]
  %v28 = vld [vmem:[%s1 + $0x38] sm:$0xff]
  %v29 = vld [vmem:[%s1 + $0x40] sm:$0xff]
  %v30 = vld [vmem:[%s1 + $0x48] sm:$0xff]
  %v31 = vld [vmem:[%s1 + $0x50] sm:$0xff]
  %v32 = vld [vmem:[%s1 + $0x58] sm:$0xff]
  %v33 = vld [vmem:[%s1 + $0x60] sm:$0xff]
  %v34 = vld [vmem:[%s1 + $0x68] sm:$0xff]
  %v35 = vld [vmem:[%s1 + $0x70] sm:$0xff]
  %v36 = vld [vmem:[%s1 + $0x78] sm:$0xff]
  %v37 = vld [vmem:[%s2] sm:$0x1]
  %v39 = vlaneseq
  %v40 = vshrl.u32 %v39, 7
  %v41 = vsub.s32 0, %v40
  %v42 = vrot.slane %v37, %v41
  %44 = vmatprep.subr.mxu0 0.0
  %45 = vmatpush1.msra.mxu0 %v21
  %46 = vmatprep.subr.mxu0 0.0
  %47 = vmatpush1.msra.mxu0 %v22
  %48 = vmatprep.subr.mxu0 0.0
  %49 = vmatpush1.msra.mxu0 %v23
  %50 = vmatprep.subr.mxu0 0.0
  %51 = vmatpush1.msra.mxu0 %v24
  %52 = vmatprep.subr.mxu0 0.0
  %53 = vmatpush1.msra.mxu0 %v25
  %54 = vmatprep.subr.mxu0 0.0
  %55 = vmatpush1.msra.mxu0 %v26
  %56 = vmatprep.subr.mxu0 0.0
  %57 = vmatpush1.msra.mxu0 %v27
  %58 = vmatprep.subr.mxu0 0.0
  %59 = vmatpush1.msra.mxu0 %v28
  %60 = vmatprep.subr.mxu0 0.0
  %61 = vmatpush1.msra.mxu0 %v29
  %62 = vmatprep.subr.mxu0 0.0
  %63 = vmatpush1.msra.mxu0 %v30
  %64 = vmatprep.subr.mxu0 0.0
  %65 = vmatpush1.msra.mxu0 %v31
  %66 = vmatprep.subr.mxu0 0.0
  %67 = vmatpush1.msra.mxu0 %v32
  %68 = vmatprep.subr.mxu0 0.0
  %69 = vmatpush1.msra.mxu0 %v33
  %70 = vmatprep.subr.mxu0 0.0
  %71 = vmatpush1.msra.mxu0 %v34
  %72 = vmatprep.subr.mxu0 0.0
  %73 = vmatpush1.msra.mxu0 %v35
  %74 = vmatprep.subr.mxu0 0.0
  %75 = vmatpush1.msra.mxu0 %v36
  %76 = vmatprep.subr.mxu0 0.0
  %77 = vmatpush1.msra.mxu0 0.0
  %78 = vmatprep.subr.mxu0 0.0
  %79 = vmatpush1.msra.mxu0 0.0
  %80 = vmatprep.subr.mxu0 0.0
  %81 = vmatpush1.msra.mxu0 0.0
  %82 = vmatprep.subr.mxu0 0.0
  %83 = vmatpush1.msra.mxu0 0.0
  %84 = vmatprep.subr.mxu0 0.0
  %85 = vmatpush1.msra.mxu0 0.0
  %86 = vmatprep.subr.mxu0 0.0
  %87 = vmatpush1.msra.mxu0 0.0
  %88 = vmatprep.subr.mxu0 0.0
  %89 = vmatpush1.msra.mxu0 0.0
  %90 = vmatprep.subr.mxu0 0.0
  %91 = vmatpush1.msra.mxu0 0.0
  %92 = vmatprep.subr.mxu0 0.0
  %93 = vmatpush1.msra.mxu0 0.0
  %94 = vmatprep.subr.mxu0 0.0
  %95 = vmatpush1.msra.mxu0 0.0
  %96 = vmatprep.subr.mxu0 0.0
  %97 = vmatpush1.msra.mxu0 0.0
  %98 = vmatprep.subr.mxu0 0.0
  %99 = vmatpush1.msra.mxu0 0.0
  %100 = vmatprep.subr.mxu0 0.0
  %101 = vmatpush1.msra.mxu0 0.0
  %102 = vmatprep.subr.mxu0 0.0
  %103 = vmatpush1.msra.mxu0 0.0
  %104 = vmatprep.subr.mxu0 0.0
  %105 = vmatpush1.msra.mxu0 0.0
  %106 = vmatprep.subr.mxu0 0.0
  %107 = vmatpush1.msra.mxu0 0.0
  %108 = vmatprep.mubr.f32.mxu0 0.0
  %109 = vmatmul.mubr.f32.gmra.mrb[0].mxu0 %v14
  %v110 = vpop.f32.mrb[0].mxu0
  %v111 = vadd.f32 %v42, %v110
  %v112 = vpop.f32.mrb[0].mxu0
  %113 = vmatprep.mubr.f32.mxu0 0.0
  %114 = vmatmul.mubr.f32.gmra.mrb[0].mxu0 %v15
  %v115 = vpop.f32.mrb[0].mxu0
  %v116 = vadd.f32 %v42, %v115
  %v117 = vpop.f32.mrb[0].mxu0
  %118 = vmatprep.mubr.f32.mxu0 0.0
  %119 = vmatmul.mubr.f32.gmra.mrb[0].mxu0 %v16
  %v120 = vpop.f32.mrb[0].mxu0
  %v121 = vadd.f32 %v42, %v120
  %v122 = vpop.f32.mrb[0].mxu0
  %123 = vmatprep.mubr.f32.mxu0 0.0
  %124 = vmatmul.mubr.f32.gmra.mrb[0].mxu0 %v17
  %v125 = vpop.f32.mrb[0].mxu0
  %v126 = vadd.f32 %v42, %v125
  %v127 = vpop.f32.mrb[0].mxu0
  %128 = vmatprep.mubr.f32.mxu0 0.0
  %129 = vmatmul.mubr.f32.gmra.mrb[0].mxu0 %v18
  %v130 = vpop.f32.mrb[0].mxu0
  %v131 = vadd.f32 %v42, %v130
  %v132 = vpop.f32.mrb[0].mxu0
  %133 = vmatprep.mubr.f32.mxu0 0.0
  %134 = vmatmul.mubr.f32.gmra.mrb[0].mxu0 %v19
  %v135 = vpop.f32.mrb[0].mxu0
  %v136 = vadd.f32 %v42, %v135
  %v137 = vpop.f32.mrb[0].mxu0
  %138 = vmatprep.mubr.f32.mxu0 0.0
  %139 = vmatmul.mubr.f32.gmra.mrb[0].mxu0 %v20
  %v140 = vpop.f32.mrb[0].mxu0
  %v141 = vadd.f32 %v42, %v140
  %v142 = vpop.f32.mrb[0].mxu0
  %143 = vdwg.mxu0
  %v144 = vmax.f32 %v111, 0.0
  %v145 = vmax.f32 %v116, 0.0
  %v146 = vmax.f32 %v121, 0.0
  %v147 = vmax.f32 %v126, 0.0
  %v148 = vmax.f32 %v131, 0.0
  %v149 = vmax.f32 %v136, 0.0
  %v150 = vmax.f32 %v141, 0.0
  %151 = vst [vmem:[%s3] sm:$0xff] %v144
  %152 = vst [vmem:[%s3 + $0x8] sm:$0xff] %v145
  %153 = vst [vmem:[%s3 + $0x10] sm:$0xff] %v146
  %154 = vst [vmem:[%s3 + $0x18] sm:$0xff] %v147
  %155 = vst [vmem:[%s3 + $0x20] sm:$0xff] %v148
  %156 = vst [vmem:[%s3 + $0x28] sm:$0xff] %v149
  %157 = vst [vmem:[%s3 + $0x30] sm:$0xff] %v150
  // Predicated region
  $region14: #{gat_forward.5} parent=0 // pred_check
    _
  $region15: #{gat_forward.5} parent=0 // pred_check_branch
    %159 = sbr.rel (0) target = $region17
  $region16: #{gat_forward.5} parent=0 // pred_region
    _
  $region17: #{gat_forward.5} parent=0 // pred_fallthru
    _
  // Predicated region
  $region18: #{gat_forward.5} parent=0 // pred_check
    _
  $region19: #{gat_forward.5} parent=0 // pred_check_branch
    %161 = sbr.rel (0) target = $region21
  $region20: #{gat_forward.5} parent=0 // pred_region
    _
  $region21: #{gat_forward.5} parent=0 // pred_fallthru
    _

// kernel: gat_forward.6
$region0: #{gat_forward.6}
  #allocation0 [shape = 'u32[]', space=smem, size = 0x4, offset = 0x4, fixed_abs, tag = 'smem constant byte address 0x4 - core index']
  #allocation1 [shape = 'u32[144,128]{1,0:T(1,128)}', space=vmem, size = 0x12000, scoped, tag = 'internal scratch']
  %s0 = inlined_call_operand.vmem [shape: f32[2,128,128], index: 0, kind: input, shape index: {}]
  %s1 = inlined_call_operand.vmem [shape: f32[2,128,128], index: 1, kind: input, shape index: {}]
  %s2 = inlined_call_operand.vmem [shape: f32[128,128], index: 2, kind: input, shape index: {}]
  %s3 = inlined_call_operand.vmem [shape: f32[1,128], index: 3, kind: input, shape index: {}]
  %s4 = inlined_call_operand.vmem [shape: f32[1,128], index: 4, kind: input, shape index: {}]
  %s5 = inlined_call_operand.vmem [shape: f32[2,128,128], index: 5, kind: output, shape index: {}]
  %s6 = sld [smem:[#allocation0]]
  $region53: #{gat_forward.6} parent=0
    _
  %s8 = ssub.s32 1, %s6
  %s9 = scalar_select 0, %s8, %s6
  loop: start=0, step=1, limit=4
  $region2: #{gat_forward.6} parent=0 // loop_pre_header
    _
  $region3: #{gat_forward.6} parent=0 // loop_header
    %s11 = sphi 0, %s15
    %p12 = scmp.ge.s32.totalorder %s11, 4
    %s21 = sphi 0, %s23
    %s24 = sphi 0, %s21
    %s25 = sphi 0, %s24
    %s41 = sphi 0, %s25
    %s47 = sphi 0, %s49
    %s50 = sphi 0, %s47
    %s51 = sphi 0, %s50
    %s67 = sphi 0, %s51
    %s71 = sphi 0, %s71
    %s73 = sphi 0, %s71
    %s74 = sphi 0, %s73
    %s88 = sphi 0, %s74
    %s92 = sphi 0, %s92
    %s94 = sphi 0, %s92
    %s95 = sphi 0, %s94
    %s109 = sphi 0, %s95
    %s113 = sphi 0, %s113
    %s115 = sphi 0, %s113
    %s116 = sphi 0, %s115
    %s130 = sphi 0, %s116
    %s136 = sphi 0, %s138
    %s139 = sphi 0, %s136
    %s140 = sphi 0, %s139
    %s156 = sphi 0, %s140
  $region4: #{gat_forward.6} parent=0 // loop_header_branch
    %14 = sbr.rel (%p12) target = $region8
  $region5: #{gat_forward.6} parent=0 // loop_body
    %s16 = ssub.s32 %s11, 1
    %s17 = ssub.s32 %s11, 2
    %s18 = sadd.s32 %s11, 1
    %s19 = ssub.s32 %s11, %s18
    %p20 = scmp.eq.s32.totalorder %s19, 0
    %s22 = sadd.s32 %s21, 1
    %s23 = scalar_select %p20, %s21, %s22
    %p26 = pneg %p20
    %p27 = scmp.eq.s32.totalorder %s11, 1
    %p28 = por %p26, %p27
    %p29 = scmp.ne.s32.totalorder %s21, %s24
    %p30 = scmp.eq.s32.totalorder %s11, 0
    %p31 = por %p29, %p30
    %p32 = scmp.ne.s32.totalorder %s21, %s24
    %p33 = scmp.eq.s32.totalorder %s16, 1
    %p34 = por %p32, %p33
    %p35 = scmp.ne.s32.totalorder %s24, %s25
    %p36 = scmp.eq.s32.totalorder %s16, 0
    %p37 = por %p35, %p36
    %p38 = scmp.ne.s32.totalorder %s24, %s25
    %p39 = scmp.eq.s32.totalorder %s17, 1
    %p40 = por %p38, %p39
    %p42 = scmp.ne.s32.totalorder %s25, %s41
    %p43 = scmp.eq.s32.totalorder %s17, 0
    %p44 = por %p42, %p43
    %s45 = ssub.s32 %s11, %s18
    %p46 = scmp.eq.s32.totalorder %s45, 0
    %s48 = sadd.s32 %s47, 1
    %s49 = scalar_select %p46, %s47, %s48
    %p52 = pneg %p46
    %p53 = scmp.eq.s32.totalorder %s11, 1
    %p54 = por %p52, %p53
    %p55 = scmp.ne.s32.totalorder %s47, %s50
    %p56 = scmp.eq.s32.totalorder %s11, 0
    %p57 = por %p55, %p56
    %p58 = scmp.ne.s32.totalorder %s47, %s50
    %p59 = scmp.eq.s32.totalorder %s16, 1
    %p60 = por %p58, %p59
    %p61 = scmp.ne.s32.totalorder %s50, %s51
    %p62 = scmp.eq.s32.totalorder %s16, 0
    %p63 = por %p61, %p62
    %p64 = scmp.ne.s32.totalorder %s50, %s51
    %p65 = scmp.eq.s32.totalorder %s17, 1
    %p66 = por %p64, %p65
    %p68 = scmp.ne.s32.totalorder %s51, %s67
    %p69 = scmp.eq.s32.totalorder %s17, 0
    %p70 = por %p68, %p69
    %s72 = sadd.s32 %s71, 1
    %p75 = scmp.eq.s32.totalorder %s11, 1
    %p76 = scmp.ne.s32.totalorder %s71, %s73
    %p77 = scmp.eq.s32.totalorder %s11, 0
    %p78 = por %p76, %p77
    %p79 = scmp.ne.s32.totalorder %s71, %s73
    %p80 = scmp.eq.s32.totalorder %s16, 1
    %p81 = por %p79, %p80
    %p82 = scmp.ne.s32.totalorder %s73, %s74
    %p83 = scmp.eq.s32.totalorder %s16, 0
    %p84 = por %p82, %p83
    %p85 = scmp.ne.s32.totalorder %s73, %s74
    %p86 = scmp.eq.s32.totalorder %s17, 1
    %p87 = por %p85, %p86
    %p89 = scmp.ne.s32.totalorder %s74, %s88
    %p90 = scmp.eq.s32.totalorder %s17, 0
    %p91 = por %p89, %p90
    %s93 = sadd.s32 %s92, 1
    %p96 = scmp.eq.s32.totalorder %s11, 1
    %p97 = scmp.ne.s32.totalorder %s92, %s94
    %p98 = scmp.eq.s32.totalorder %s11, 0
    %p99 = por %p97, %p98
    %p100 = scmp.ne.s32.totalorder %s92, %s94
    %p101 = scmp.eq.s32.totalorder %s16, 1
    %p102 = por %p100, %p101
    %p103 = scmp.ne.s32.totalorder %s94, %s95
    %p104 = scmp.eq.s32.totalorder %s16, 0
    %p105 = por %p103, %p104
    %p106 = scmp.ne.s32.totalorder %s94, %s95
    %p107 = scmp.eq.s32.totalorder %s17, 1
    %p108 = por %p106, %p107
    %p110 = scmp.ne.s32.totalorder %s95, %s109
    %p111 = scmp.eq.s32.totalorder %s17, 0
    %p112 = por %p110, %p111
    %s114 = sadd.s32 %s113, 1
    %p117 = scmp.eq.s32.totalorder %s11, 1
    %p118 = scmp.ne.s32.totalorder %s113, %s115
    %p119 = scmp.eq.s32.totalorder %s11, 0
    %p120 = por %p118, %p119
    %p121 = scmp.ne.s32.totalorder %s113, %s115
    %p122 = scmp.eq.s32.totalorder %s16, 1
    %p123 = por %p121, %p122
    %p124 = scmp.ne.s32.totalorder %s115, %s116
    %p125 = scmp.eq.s32.totalorder %s16, 0
    %p126 = por %p124, %p125
    %p127 = scmp.ne.s32.totalorder %s115, %s116
    %p128 = scmp.eq.s32.totalorder %s17, 1
    %p129 = por %p127, %p128
    %p131 = scmp.ne.s32.totalorder %s116, %s130
    %p132 = scmp.eq.s32.totalorder %s17, 0
    %p133 = por %p131, %p132
    %s134 = ssub.s32 %s11, %s18
    %p135 = scmp.eq.s32.totalorder %s134, 0
    %s137 = sadd.s32 %s136, 1
    %s138 = scalar_select %p135, %s136, %s137
    %p141 = pneg %p135
    %p142 = scmp.eq.s32.totalorder %s11, 1
    %p143 = por %p141, %p142
    %p144 = scmp.ne.s32.totalorder %s136, %s139
    %p145 = scmp.eq.s32.totalorder %s11, 0
    %p146 = por %p144, %p145
    %p147 = scmp.ne.s32.totalorder %s136, %s139
    %p148 = scmp.eq.s32.totalorder %s16, 1
    %p149 = por %p147, %p148
    %p150 = scmp.ne.s32.totalorder %s139, %s140
    %p151 = scmp.eq.s32.totalorder %s16, 0
    %p152 = por %p150, %p151
    %p153 = scmp.ne.s32.totalorder %s139, %s140
    %p154 = scmp.eq.s32.totalorder %s17, 1
    %p155 = por %p153, %p154
    %p157 = scmp.ne.s32.totalorder %s140, %s156
    %p158 = scmp.eq.s32.totalorder %s17, 0
    %p159 = por %p157, %p158
    %p160 = scmp.le.s32.totalorder 1, %s11
    %p161 = scmp.lt.s32.totalorder %s11, 3
    %p162 = pnand %p160, %p161
    %p163 = pneg %p162
    // Predicated region
    $region9: #{gat_forward.6} parent=5 // pred_check
      _
    $region10: #{gat_forward.6} parent=5 // pred_check_branch
      %165 = sbr.rel (%p162) target = $region12
    $region11: #{gat_forward.6} parent=5 // pred_region
      %s166 = ssub.s32 %s11, 1
      // Predicated region
      $region13: #{gat_forward.6} parent=11 // pred_check
        %p167 = pneg %p84
      $region14: #{gat_forward.6} parent=11 // pred_check_branch
        %169 = sbr.rel (%p167) target = $region16
      $region15: #{gat_forward.6} parent=11 // pred_region
        _
      $region16: #{gat_forward.6} parent=11 // pred_fallthru
        _
      // Predicated region
      $region17: #{gat_forward.6} parent=11 // pred_check
        %p170 = pneg %p105
      $region18: #{gat_forward.6} parent=11 // pred_check_branch
        %172 = sbr.rel (%p170) target = $region20
      $region19: #{gat_forward.6} parent=11 // pred_region
        _
      $region20: #{gat_forward.6} parent=11 // pred_fallthru
        _
      // Predicated region
      $region21: #{gat_forward.6} parent=11 // pred_check
        %p173 = pneg %p126
      $region22: #{gat_forward.6} parent=11 // pred_check_branch
        %175 = sbr.rel (%p173) target = $region24
      $region23: #{gat_forward.6} parent=11 // pred_region
        _
      $region24: #{gat_forward.6} parent=11 // pred_fallthru
        _
    $region12: #{gat_forward.6} parent=5 // pred_fallthru
      _
    %p176 = scmp.lt.s32.totalorder %s11, 2
    // Predicated region
    $region25: #{gat_forward.6} parent=5 // pred_check
      %p177 = pneg %p176
    $region26: #{gat_forward.6} parent=5 // pred_check_branch
      %179 = sbr.rel (%p177) target = $region28
    $region27: #{gat_forward.6} parent=5 // pred_region
      // Predicated region
      $region29: #{gat_forward.6} parent=27 // pred_check
        %p180 = pneg %p31
      $region30: #{gat_forward.6} parent=27 // pred_check_branch
        %182 = sbr.rel (%p180) target = $region32
      $region31: #{gat_forward.6} parent=27 // pred_region
        %p183 = scmp.lt.s32.totalorder %s11, 1
        %s184 = scalar_select %p183, %s11, 1
        %s185 = smul.addr %s184, 16
        %s186 = smul.addr %s185, 8
        %s187 = scalar_lea.vmem %s0, %s186
      $region32: #{gat_forward.6} parent=27 // pred_fallthru
        _
      // Predicated region
      $region33: #{gat_forward.6} parent=27 // pred_check
        %p188 = pneg %p57
      $region34: #{gat_forward.6} parent=27 // pred_check_branch
        %190 = sbr.rel (%p188) target = $region36
      $region35: #{gat_forward.6} parent=27 // pred_region
        %p191 = scmp.lt.s32.totalorder %s11, 1
        %s192 = scalar_select %p191, %s11, 1
        %s193 = smul.addr %s192, 16
        %s194 = smul.addr %s193, 8
        %s195 = scalar_lea.vmem %s1, %s194
      $region36: #{gat_forward.6} parent=27 // pred_fallthru
        _
    $region28: #{gat_forward.6} parent=5 // pred_fallthru
      _
    %p196 = scmp.le.s32.totalorder 1, %s11
    %p197 = scmp.lt.s32.totalorder %s11, 3
    %p198 = pnand %p196, %p197
    %p199 = pneg %p198
    // Predicated region
    $region37: #{gat_forward.6} parent=5 // pred_check
      _
    $region38: #{gat_forward.6} parent=5 // pred_check_branch
      %201 = sbr.rel (%p198) target = $region40
    $region39: #{gat_forward.6} parent=5 // pred_region
      %s202 = ssub.s32 %s11, 1
      %p203 = scmp.lt.s32.totalorder %s16, 1
      %s204 = scalar_select %p203, %s16, 1
      %s205 = smul.addr %s204, 16
      %s206 = smul.addr %s205, 8
      %s207 = scalar_lea.vmem %s0, %s206
      %p208 = pneg %p37
      %p209 = pneg %p34
      %p210 = scmp.lt.s32.totalorder %s16, 1
      %s211 = scalar_select %p210, %s16, 1
      %s212 = smul.addr %s211, 16
      %s213 = smul.addr %s212, 8
      %s214 = scalar_lea.vmem %s1, %s213
      %p215 = pneg %p63
      %p216 = pneg %p60
      %p217 = pneg %p84
      %p218 = pneg %p81
      %p219 = pneg %p105
      %p220 = pneg %p102
      %p221 = pneg %p126
      %p222 = pneg %p123
      %p223 = pneg %p152
      %p224 = pneg %p149
      %p225 = scmp.lt.s32.totalorder %s16, 1
      %s226 = scalar_select %p225, %s16, 1
      %s227 = smul.addr %s226, 16
      %s228 = smul.addr %s227, 8
      %s229 = scalar_lea.vmem %s5, %s228
      %p230 = scmp.lt.s32.totalorder %s16, 1
      %s231 = scalar_select %p230, %s16, 1
      %s232 = smul.addr %s231, 16
      %s233 = smul.addr %s232, 8
      %s234 = scalar_lea.vmem %s0, %s233
      %p235 = scmp.lt.s32.totalorder %s16, 1
      %s236 = scalar_select %p235, %s16, 1
      %s237 = smul.addr %s236, 16
      %s238 = smul.addr %s237, 8
      %s239 = scalar_lea.vmem %s1, %s238
      %p240 = scmp.lt.s32.totalorder %s16, 1
      %s241 = scalar_select %p240, %s16, 1
      %s242 = smul.addr %s241, 16
      %s243 = smul.addr %s242, 8
      %s244 = scalar_lea.vmem %s5, %s243
      %v245 = vld [vmem:[%s234] sm:$0xff]
      %v246 = vld [vmem:[%s234 + $0x8] sm:$0xff]
      %v247 = vld [vmem:[%s234 + $0x10] sm:$0xff]
      %v248 = vld [vmem:[%s234 + $0x18] sm:$0xff]
      %v249 = vld [vmem:[%s234 + $0x20] sm:$0xff]
      %v250 = vld [vmem:[%s234 + $0x28] sm:$0xff]
      %v251 = vld [vmem:[%s234 + $0x30] sm:$0xff]
      %v252 = vld [vmem:[%s234 + $0x38] sm:$0xff]
      %v253 = vld [vmem:[%s234 + $0x40] sm:$0xff]
      %v254 = vld [vmem:[%s234 + $0x48] sm:$0xff]
      %v255 = vld [vmem:[%s234 + $0x50] sm:$0xff]
      %v256 = vld [vmem:[%s234 + $0x58] sm:$0xff]
      %v257 = vld [vmem:[%s234 + $0x60] sm:$0xff]
      %v258 = vld [vmem:[%s234 + $0x68] sm:$0xff]
      %v259 = vld [vmem:[%s234 + $0x70] sm:$0xff]
      %v260 = vld [vmem:[%s234 + $0x78] sm:$0xff]
      %v261 = vld [vmem:[%s239] sm:$0xff]
      %v262 = vld [vmem:[%s239 + $0x8] sm:$0xff]
      %v263 = vld [vmem:[%s239 + $0x10] sm:$0xff]
      %v264 = vld [vmem:[%s239 + $0x18] sm:$0xff]
      %v265 = vld [vmem:[%s239 + $0x20] sm:$0xff]
      %v266 = vld [vmem:[%s239 + $0x28] sm:$0xff]
      %v267 = vld [vmem:[%s239 + $0x30] sm:$0xff]
      %v268 = vld [vmem:[%s239 + $0x38] sm:$0xff]
      %v269 = vld [vmem:[%s239 + $0x40] sm:$0xff]
      %v270 = vld [vmem:[%s239 + $0x48] sm:$0xff]
      %v271 = vld [vmem:[%s239 + $0x50] sm:$0xff]
      %v272 = vld [vmem:[%s239 + $0x58] sm:$0xff]
      %v273 = vld [vmem:[%s239 + $0x60] sm:$0xff]
      %v274 = vld [vmem:[%s239 + $0x68] sm:$0xff]
      %v275 = vld [vmem:[%s239 + $0x70] sm:$0xff]
      %v276 = vld [vmem:[%s239 + $0x78] sm:$0xff]
      %v277 = vld [vmem:[%s2] sm:$0xff]
      %v278 = vld [vmem:[%s2 + $0x8] sm:$0xff]
      %v279 = vld [vmem:[%s2 + $0x10] sm:$0xff]
      %v280 = vld [vmem:[%s2 + $0x18] sm:$0xff]
      %v281 = vld [vmem:[%s2 + $0x20] sm:$0xff]
      %v282 = vld [vmem:[%s2 + $0x28] sm:$0xff]
      %v283 = vld [vmem:[%s2 + $0x30] sm:$0xff]
      %v284 = vld [vmem:[%s2 + $0x38] sm:$0xff]
      %v285 = vld [vmem:[%s2 + $0x40] sm:$0xff]
      %v286 = vld [vmem:[%s2 + $0x48] sm:$0xff]
      %v287 = vld [vmem:[%s2 + $0x50] sm:$0xff]
      %v288 = vld [vmem:[%s2 + $0x58] sm:$0xff]
      %v289 = vld [vmem:[%s2 + $0x60] sm:$0xff]
      %v290 = vld [vmem:[%s2 + $0x68] sm:$0xff]
      %v291 = vld [vmem:[%s2 + $0x70] sm:$0xff]
      %v292 = vld [vmem:[%s2 + $0x78] sm:$0xff]
      %293 = vmatprep.subr.mxu0 0.0
      %294 = vmatpush1.msra.mxu0 %v277
      %295 = vmatprep.subr.mxu0 0.0
      %296 = vmatpush1.msra.mxu0 %v278
      %297 = vmatprep.subr.mxu0 0.0
      %298 = vmatpush1.msra.mxu0 %v279
      %299 = vmatprep.subr.mxu0 0.0
      %300 = vmatpush1.msra.mxu0 %v280
      %301 = vmatprep.subr.mxu0 0.0
      %302 = vmatpush1.msra.mxu0 %v281
      %303 = vmatprep.subr.mxu0 0.0
      %304 = vmatpush1.msra.mxu0 %v282
      %305 = vmatprep.subr.mxu0 0.0
      %306 = vmatpush1.msra.mxu0 %v283
      %307 = vmatprep.subr.mxu0 0.0
      %308 = vmatpush1.msra.mxu0 %v284
      %309 = vmatprep.subr.mxu0 0.0
      %310 = vmatpush1.msra.mxu0 %v285
      %311 = vmatprep.subr.mxu0 0.0
      %312 = vmatpush1.msra.mxu0 %v286
      %313 = vmatprep.subr.mxu0 0.0
      %314 = vmatpush1.msra.mxu0 %v287
      %315 = vmatprep.subr.mxu0 0.0
      %316 = vmatpush1.msra.mxu0 %v288
      %317 = vmatprep.subr.mxu0 0.0
      %318 = vmatpush1.msra.mxu0 %v289
      %319 = vmatprep.subr.mxu0 0.0
      %320 = vmatpush1.msra.mxu0 %v290
      %321 = vmatprep.subr.mxu0 0.0
      %322 = vmatpush1.msra.mxu0 %v291
      %323 = vmatprep.subr.mxu0 0.0
      %324 = vmatpush1.msra.mxu0 %v292
      %325 = vmatprep.subr.mxu0 0.0
      %326 = vmatpush1.msra.mxu0 0.0
      %327 = vmatprep.subr.mxu0 0.0
      %328 = vmatpush1.msra.mxu0 0.0
      %329 = vmatprep.subr.mxu0 0.0
      %330 = vmatpush1.msra.mxu0 0.0
      %331 = vmatprep.subr.mxu0 0.0
      %332 = vmatpush1.msra.mxu0 0.0
      %333 = vmatprep.subr.mxu0 0.0
      %334 = vmatpush1.msra.mxu0 0.0
      %335 = vmatprep.subr.mxu0 0.0
      %336 = vmatpush1.msra.mxu0 0.0
      %337 = vmatprep.subr.mxu0 0.0
      %338 = vmatpush1.msra.mxu0 0.0
      %339 = vmatprep.subr.mxu0 0.0
      %340 = vmatpush1.msra.mxu0 0.0
      %341 = vmatprep.subr.mxu0 0.0
      %342 = vmatpush1.msra.mxu0 0.0
      %343 = vmatprep.subr.mxu0 0.0
      %344 = vmatpush1.msra.mxu0 0.0
      %345 = vmatprep.subr.mxu0 0.0
      %346 = vmatpush1.msra.mxu0 0.0
      %347 = vmatprep.subr.mxu0 0.0
      %348 = vmatpush1.msra.mxu0 0.0
      %349 = vmatprep.subr.mxu0 0.0
      %350 = vmatpush1.msra.mxu0 0.0
      %351 = vmatprep.subr.mxu0 0.0
      %352 = vmatpush1.msra.mxu0 0.0
      %353 = vmatprep.subr.mxu0 0.0
      %354 = vmatpush1.msra.mxu0 0.0
      %355 = vmatprep.subr.mxu0 0.0
      %356 = vmatpush1.msra.mxu0 0.0
      %357 = vmatprep.mubr.f32.mxu0 0.0
      %358 = vmatmul.mubr.f32.gmra.mrb[0].mxu0 %v245
      %v359 = vpop.f32.mrb[0].mxu0
      %v360 = vadd.f32 0.0, %v359
      %v361 = vpop.f32.mrb[0].mxu0
      %362 = vmatprep.mubr.f32.mxu0 0.0
      %363 = vmatmul.mubr.f32.gmra.mrb[0].mxu0 %v246
      %v364 = vpop.f32.mrb[0].mxu0
      %v365 = vadd.f32 0.0, %v364
      %v366 = vpop.f32.mrb[0].mxu0
      %367 = vmatprep.mubr.f32.mxu0 0.0
      %368 = vmatmul.mubr.f32.gmra.mrb[0].mxu0 %v247
      %v369 = vpop.f32.mrb[0].mxu0
      %v370 = vadd.f32 0.0, %v369
      %v371 = vpop.f32.mrb[0].mxu0
      %372 = vmatprep.mubr.f32.mxu0 0.0
      %373 = vmatmul.mubr.f32.gmra.mrb[0].mxu0 %v248
      %v374 = vpop.f32.mrb[0].mxu0
      %v375 = vadd.f32 0.0, %v374
      %v376 = vpop.f32.mrb[0].mxu0
      %377 = vmatprep.mubr.f32.mxu0 0.0
      %378 = vmatmul.mubr.f32.gmra.mrb[0].mxu0 %v249
      %v379 = vpop.f32.mrb[0].mxu0
      %v380 = vadd.f32 0.0, %v379
      %v381 = vpop.f32.mrb[0].mxu0
      %382 = vmatprep.mubr.f32.mxu0 0.0
      %383 = vmatmul.mubr.f32.gmra.mrb[0].mxu0 %v250
      %v384 = vpop.f32.mrb[0].mxu0
      %v385 = vadd.f32 0.0, %v384
      %v386 = vpop.f32.mrb[0].mxu0
      %387 = vmatprep.mubr.f32.mxu0 0.0
      %388 = vmatmul.mubr.f32.gmra.mrb[0].mxu0 %v251
      %v389 = vpop.f32.mrb[0].mxu0
      %v390 = vadd.f32 0.0, %v389
      %v391 = vpop.f32.mrb[0].mxu0
      %392 = vmatprep.mubr.f32.mxu0 0.0
      %393 = vmatmul.mubr.f32.gmra.mrb[0].mxu0 %v252
      %v394 = vpop.f32.mrb[0].mxu0
      %v395 = vadd.f32 0.0, %v394
      %v396 = vpop.f32.mrb[0].mxu0
      %397 = vmatprep.mubr.f32.mxu0 0.0
      %398 = vmatmul.mubr.f32.gmra.mrb[0].mxu0 %v253
      %v399 = vpop.f32.mrb[0].mxu0
      %v400 = vadd.f32 0.0, %v399
      %v401 = vpop.f32.mrb[0].mxu0
      %402 = vmatprep.mubr.f32.mxu0 0.0
      %403 = vmatmul.mubr.f32.gmra.mrb[0].mxu0 %v254
      %v404 = vpop.f32.mrb[0].mxu0
      %v405 = vadd.f32 0.0, %v404
      %v406 = vpop.f32.mrb[0].mxu0
      %407 = vmatprep.mubr.f32.mxu0 0.0
      %408 = vmatmul.mubr.f32.gmra.mrb[0].mxu0 %v255
      %v409 = vpop.f32.mrb[0].mxu0
      %v410 = vadd.f32 0.0, %v409
      %v411 = vpop.f32.mrb[0].mxu0
      %412 = vmatprep.mubr.f32.mxu0 0.0
      %413 = vmatmul.mubr.f32.gmra.mrb[0].mxu0 %v256
      %v414 = vpop.f32.mrb[0].mxu0
      %v415 = vadd.f32 0.0, %v414
      %v416 = vpop.f32.mrb[0].mxu0
      %417 = vmatprep.mubr.f32.mxu0 0.0
      %418 = vmatmul.mubr.f32.gmra.mrb[0].mxu0 %v257
      %v419 = vpop.f32.mrb[0].mxu0
      %v420 = vadd.f32 0.0, %v419
      %v421 = vpop.f32.mrb[0].mxu0
      %422 = vmatprep.mubr.f32.mxu0 0.0
      %423 = vmatmul.mubr.f32.gmra.mrb[0].mxu0 %v258
      %v424 = vpop.f32.mrb[0].mxu0
      %v425 = vadd.f32 0.0, %v424
      %v426 = vpop.f32.mrb[0].mxu0
      %427 = vmatprep.mubr.f32.mxu0 0.0
      %428 = vmatmul.mubr.f32.gmra.mrb[0].mxu0 %v259
      %v429 = vpop.f32.mrb[0].mxu0
      %v430 = vadd.f32 0.0, %v429
      %v431 = vpop.f32.mrb[0].mxu0
      %432 = vmatprep.mubr.f32.mxu0 0.0
      %433 = vmatmul.mubr.f32.gmra.mrb[0].mxu0 %v260
      %v434 = vpop.f32.mrb[0].mxu0
      %v435 = vadd.f32 0.0, %v434
      %v436 = vpop.f32.mrb[0].mxu0
      %437 = vdwg.mxu0
      %v438 = vld [vmem:[%s3] sm:$0x1]
      %v440 = vlaneseq
      %v441 = vshrl.u32 %v440, 7
      %v442 = vsub.s32 0, %v441
      %v443 = vrot.slane %v438, %v442
      %v445 = vmul.f32 %v360, %v443
      %v446 = vmul.f32 %v365, %v443
      %v447 = vmul.f32 %v370, %v443
      %v448 = vmul.f32 %v375, %v443
      %v449 = vmul.f32 %v380, %v443
      %v450 = vmul.f32 %v385, %v443
      %v451 = vmul.f32 %v390, %v443
      %v452 = vmul.f32 %v395, %v443
      %v453 = vmul.f32 %v400, %v443
      %v454 = vmul.f32 %v405, %v443
      %v455 = vmul.f32 %v410, %v443
      %v456 = vmul.f32 %v415, %v443
      %v457 = vmul.f32 %v420, %v443
      %v458 = vmul.f32 %v425, %v443
      %v459 = vmul.f32 %v430, %v443
      %v460 = vmul.f32 %v435, %v443
      %461 = vadd.xlane.f32.xlu0 %v445
      %v462 = vpop.xlane.xlu0 %461
      %463 = vadd.xlane.f32.xlu0 %v446
      %v464 = vpop.xlane.xlu0 %463
      %465 = vadd.xlane.f32.xlu0 %v447
      %v466 = vpop.xlane.xlu0 %465
      %467 = vadd.xlane.f32.xlu0 %v448
      %v468 = vpop.xlane.xlu0 %467
      %469 = vadd.xlane.f32.xlu0 %v449
      %v470 = vpop.xlane.xlu0 %469
      %471 = vadd.xlane.f32.xlu0 %v450
      %v472 = vpop.xlane.xlu0 %471
      %473 = vadd.xlane.f32.xlu0 %v451
      %v474 = vpop.xlane.xlu0 %473
      %475 = vadd.xlane.f32.xlu0 %v452
      %v476 = vpop.xlane.xlu0 %475
      %477 = vadd.xlane.f32.xlu0 %v453
      %v478 = vpop.xlane.xlu0 %477
      %479 = vadd.xlane.f32.xlu0 %v454
      %v480 = vpop.xlane.xlu0 %479
      %481 = vadd.xlane.f32.xlu0 %v455
      %v482 = vpop.xlane.xlu0 %481
      %483 = vadd.xlane.f32.xlu0 %v456
      %v484 = vpop.xlane.xlu0 %483
      %485 = vadd.xlane.f32.xlu0 %v457
      %v486 = vpop.xlane.xlu0 %485
      %487 = vadd.xlane.f32.xlu0 %v458
      %v488 = vpop.xlane.xlu0 %487
      %489 = vadd.xlane.f32.xlu0 %v459
      %v490 = vpop.xlane.xlu0 %489
      %491 = vadd.xlane.f32.xlu0 %v460
      %v492 = vpop.xlane.xlu0 %491
      %v493 = vld [vmem:[%s4] sm:$0x1]
      %494 = vmatprep.subr.mxu0 0.0
      %495 = vmatpush1.xpose.msra.mxu0 %v360
      %496 = vmatprep.subr.mxu0 0.0
      %497 = vmatpush1.xpose.msra.mxu0 %v365
      %498 = vmatprep.subr.mxu0 0.0
      %499 = vmatpush1.xpose.msra.mxu0 %v370
      %500 = vmatprep.subr.mxu0 0.0
      %501 = vmatpush1.xpose.msra.mxu0 %v375
      %502 = vmatprep.subr.mxu0 0.0
      %503 = vmatpush1.xpose.msra.mxu0 %v380
      %504 = vmatprep.subr.mxu0 0.0
      %505 = vmatpush1.xpose.msra.mxu0 %v385
      %506 = vmatprep.subr.mxu0 0.0
      %507 = vmatpush1.xpose.msra.mxu0 %v390
      %508 = vmatprep.subr.mxu0 0.0
      %509 = vmatpush1.xpose.msra.mxu0 %v395
      %510 = vmatprep.subr.mxu0 0.0
      %511 = vmatpush1.xpose.msra.mxu0 %v400
      %512 = vmatprep.subr.mxu0 0.0
      %513 = vmatpush1.xpose.msra.mxu0 %v405
      %514 = vmatprep.subr.mxu0 0.0
      %515 = vmatpush1.xpose.msra.mxu0 %v410
      %516 = vmatprep.subr.mxu0 0.0
      %517 = vmatpush1.xpose.msra.mxu0 %v415
      %518 = vmatprep.subr.mxu0 0.0
      %519 = vmatpush1.xpose.msra.mxu0 %v420
      %520 = vmatprep.subr.mxu0 0.0
      %521 = vmatpush1.xpose.msra.mxu0 %v425
      %522 = vmatprep.subr.mxu0 0.0
      %523 = vmatpush1.xpose.msra.mxu0 %v430
      %524 = vmatprep.subr.mxu0 0.0
      %525 = vmatpush1.xpose.msra.mxu0 %v435
      %526 = vmatprep.subr.mxu0 0.0
      %527 = vmatpush1.xpose.msra.mxu0 0.0
      %528 = vmatprep.subr.mxu0 0.0
      %529 = vmatpush1.xpose.msra.mxu0 0.0
      %530 = vmatprep.subr.mxu0 0.0
      %531 = vmatpush1.xpose.msra.mxu0 0.0
      %532 = vmatprep.subr.mxu0 0.0
      %533 = vmatpush1.xpose.msra.mxu0 0.0
      %534 = vmatprep.subr.mxu0 0.0
      %535 = vmatpush1.xpose.msra.mxu0 0.0
      %536 = vmatprep.subr.mxu0 0.0
      %537 = vmatpush1.xpose.msra.mxu0 0.0
      %538 = vmatprep.subr.mxu0 0.0
      %539 = vmatpush1.xpose.msra.mxu0 0.0
      %540 = vmatprep.subr.mxu0 0.0
      %541 = vmatpush1.xpose.msra.mxu0 0.0
      %542 = vmatprep.subr.mxu0 0.0
      %543 = vmatpush1.xpose.msra.mxu0 0.0
      %544 = vmatprep.subr.mxu0 0.0
      %545 = vmatpush1.xpose.msra.mxu0 0.0
      %546 = vmatprep.subr.mxu0 0.0
      %547 = vmatpush1.xpose.msra.mxu0 0.0
      %548 = vmatprep.subr.mxu0 0.0
      %549 = vmatpush1.xpose.msra.mxu0 0.0
      %550 = vmatprep.subr.mxu0 0.0
      %551 = vmatpush1.xpose.msra.mxu0 0.0
      %552 = vmatprep.subr.mxu0 0.0
      %553 = vmatpush1.xpose.msra.mxu0 0.0
      %554 = vmatprep.subr.mxu0 0.0
      %555 = vmatpush1.xpose.msra.mxu0 0.0
      %556 = vmatprep.subr.mxu0 0.0
      %557 = vmatpush1.xpose.msra.mxu0 0.0
      %558 = vmatprep.mubr.f32.mxu0 0.0
      %559 = vmatmul.mubr.f32.gmra.mrb[0].mxu0 %v493
      %v560 = vpop.f32.mrb[0].mxu0
      %v561 = vadd.f32 0.0, %v560
      %v562 = vpop.f32.mrb[0].mxu0
      %563 = vdwg.mxu0
      %v564 = vlaneseq
      %v565 = vshrl.u32 %v564, 7
      %v566 = vsub.s32 0, %v565
      %v567 = vrot.slane %v561, %v566
      %v568 = vadd.f32 %v462, %v567
      %v569 = vadd.f32 %v464, %v567
      %v570 = vadd.f32 %v466, %v567
      %v571 = vadd.f32 %v468, %v567
      %v572 = vadd.f32 %v470, %v567
      %v573 = vadd.f32 %v472, %v567
      %v574 = vadd.f32 %v474, %v567
      %v575 = vadd.f32 %v476, %v567
      %v576 = vadd.f32 %v478, %v567
      %v577 = vadd.f32 %v480, %v567
      %v578 = vadd.f32 %v482, %v567
      %v579 = vadd.f32 %v484, %v567
      %v580 = vadd.f32 %v486, %v567
      %v581 = vadd.f32 %v488, %v567
      %v582 = vadd.f32 %v490, %v567
      %v583 = vadd.f32 %v492, %v567
      %vm584 = vcmp.gt.f32.partialorder %v568, 0.0
      %vm585 = vcmp.gt.f32.partialorder %v569, 0.0
      %vm586 = vcmp.gt.f32.partialorder %v570, 0.0
      %vm587 = vcmp.gt.f32.partialorder %v571, 0.0
      %vm588 = vcmp.gt.f32.partialorder %v572, 0.0
      %vm589 = vcmp.gt.f32.partialorder %v573, 0.0
      %vm590 = vcmp.gt.f32.partialorder %v574, 0.0
      %vm591 = vcmp.gt.f32.partialorder %v575, 0.0
      %vm592 = vcmp.gt.f32.partialorder %v576, 0.0
      %vm593 = vcmp.gt.f32.partialorder %v577, 0.0
      %vm594 = vcmp.gt.f32.partialorder %v578, 0.0
      %vm595 = vcmp.gt.f32.partialorder %v579, 0.0
      %vm596 = vcmp.gt.f32.partialorder %v580, 0.0
      %vm597 = vcmp.gt.f32.partialorder %v581, 0.0
      %vm598 = vcmp.gt.f32.partialorder %v582, 0.0
      %vm599 = vcmp.gt.f32.partialorder %v583, 0.0
      %v600 = vmul.f32 %v568, 0.2
      %v601 = vmul.f32 %v569, 0.2
      %v602 = vmul.f32 %v570, 0.2
      %v603 = vmul.f32 %v571, 0.2
      %v604 = vmul.f32 %v572, 0.2
      %v605 = vmul.f32 %v573, 0.2
      %v606 = vmul.f32 %v574, 0.2
      %v607 = vmul.f32 %v575, 0.2
      %v608 = vmul.f32 %v576, 0.2
      %v609 = vmul.f32 %v577, 0.2
      %v610 = vmul.f32 %v578, 0.2
      %v611 = vmul.f32 %v579, 0.2
      %v612 = vmul.f32 %v580, 0.2
      %v613 = vmul.f32 %v581, 0.2
      %v614 = vmul.f32 %v582, 0.2
      %v615 = vmul.f32 %v583, 0.2
      %v616 = vsel %vm584, %v568, %v600
      %v617 = vsel %vm585, %v569, %v601
      %v618 = vsel %vm586, %v570, %v602
      %v619 = vsel %vm587, %v571, %v603
      %v620 = vsel %vm588, %v572, %v604
      %v621 = vsel %vm589, %v573, %v605
      %v622 = vsel %vm590, %v574, %v606
      %v623 = vsel %vm591, %v575, %v607
      %v624 = vsel %vm592, %v576, %v608
      %v625 = vsel %vm593, %v577, %v609
      %v626 = vsel %vm594, %v578, %v610
      %v627 = vsel %vm595, %v579, %v611
      %v628 = vsel %vm596, %v580, %v612
      %v629 = vsel %vm597, %v581, %v613
      %v630 = vsel %vm598, %v582, %v614
      %v631 = vsel %vm599, %v583, %v615
      %vm632 = vcmp.gt.f32.partialorder %v261, 0.0
      %vm633 = vcmp.gt.f32.partialorder %v262, 0.0
      %vm634 = vcmp.gt.f32.partialorder %v263, 0.0
      %vm635 = vcmp.gt.f32.partialorder %v264, 0.0
      %vm636 = vcmp.gt.f32.partialorder %v265, 0.0
      %vm637 = vcmp.gt.f32.partialorder %v266, 0.0
      %vm638 = vcmp.gt.f32.partialorder %v267, 0.0
      %vm639 = vcmp.gt.f32.partialorder %v268, 0.0
      %vm640 = vcmp.gt.f32.partialorder %v269, 0.0
      %vm641 = vcmp.gt.f32.partialorder %v270, 0.0
      %vm642 = vcmp.gt.f32.partialorder %v271, 0.0
      %vm643 = vcmp.gt.f32.partialorder %v272, 0.0
      %vm644 = vcmp.gt.f32.partialorder %v273, 0.0
      %vm645 = vcmp.gt.f32.partialorder %v274, 0.0
      %vm646 = vcmp.gt.f32.partialorder %v275, 0.0
      %vm647 = vcmp.gt.f32.partialorder %v276, 0.0
      %v648 = vsel %vm632, %v616, -9e+15
      %v649 = vsel %vm633, %v617, -9e+15
      %v650 = vsel %vm634, %v618, -9e+15
      %v651 = vsel %vm635, %v619, -9e+15
      %v652 = vsel %vm636, %v620, -9e+15
      %v653 = vsel %vm637, %v621, -9e+15
      %v654 = vsel %vm638, %v622, -9e+15
      %v655 = vsel %vm639, %v623, -9e+15
      %v656 = vsel %vm640, %v624, -9e+15
      %v657 = vsel %vm641, %v625, -9e+15
      %v658 = vsel %vm642, %v626, -9e+15
      %v659 = vsel %vm643, %v627, -9e+15
      %v660 = vsel %vm644, %v628, -9e+15
      %v661 = vsel %vm645, %v629, -9e+15
      %v662 = vsel %vm646, %v630, -9e+15
      %v663 = vsel %vm647, %v631, -9e+15
      %664 = vmax.xlane.f32.xlu0 %v648
      %v665 = vpop.xlane.xlu0 %664
      %666 = vmax.xlane.f32.xlu0 %v649
      %v667 = vpop.xlane.xlu0 %666
      %668 = vmax.xlane.f32.xlu0 %v650
      %v669 = vpop.xlane.xlu0 %668
      %670 = vmax.xlane.f32.xlu0 %v651
      %v671 = vpop.xlane.xlu0 %670
      %672 = vmax.xlane.f32.xlu0 %v652
      %v673 = vpop.xlane.xlu0 %672
      %674 = vmax.xlane.f32.xlu0 %v653
      %v675 = vpop.xlane.xlu0 %674
      %676 = vmax.xlane.f32.xlu0 %v654
      %v677 = vpop.xlane.xlu0 %676
      %678 = vmax.xlane.f32.xlu0 %v655
      %v679 = vpop.xlane.xlu0 %678
      %680 = vmax.xlane.f32.xlu0 %v656
      %v681 = vpop.xlane.xlu0 %680
      %682 = vmax.xlane.f32.xlu0 %v657
      %v683 = vpop.xlane.xlu0 %682
      %684 = vmax.xlane.f32.xlu0 %v658
      %v685 = vpop.xlane.xlu0 %684
      %686 = vmax.xlane.f32.xlu0 %v659
      %v687 = vpop.xlane.xlu0 %686
      %688 = vmax.xlane.f32.xlu0 %v660
      %v689 = vpop.xlane.xlu0 %688
      %690 = vmax.xlane.f32.xlu0 %v661
      %v691 = vpop.xlane.xlu0 %690
      %692 = vmax.xlane.f32.xlu0 %v662
      %v693 = vpop.xlane.xlu0 %692
      %694 = vmax.xlane.f32.xlu0 %v663
      %v695 = vpop.xlane.xlu0 %694
      %v696 = vsub.f32 %v648, %v665
      %v697 = vsub.f32 %v649, %v667
      %v698 = vsub.f32 %v650, %v669
      %v699 = vsub.f32 %v651, %v671
      %v700 = vsub.f32 %v652, %v673
      %v701 = vsub.f32 %v653, %v675
      %v702 = vsub.f32 %v654, %v677
      %v703 = vsub.f32 %v655, %v679
      %v704 = vsub.f32 %v656, %v681
      %v705 = vsub.f32 %v657, %v683
      %v706 = vsub.f32 %v658, %v685
      %v707 = vsub.f32 %v659, %v687
      %v708 = vsub.f32 %v660, %v689
      %v709 = vsub.f32 %v661, %v691
      %v710 = vsub.f32 %v662, %v693
      %v711 = vsub.f32 %v663, %v695
      %v712 = vmul.f32 %v696, 1.442695
      %v713 = vpow.pop %v712
      %v714 = vmul.f32 %v697, 1.442695
      %v715 = vpow.pop %v714
      %v716 = vmul.f32 %v698, 1.442695
      %v717 = vpow.pop %v716
      %v718 = vmul.f32 %v699, 1.442695
      %v719 = vpow.pop %v718
      %v720 = vmul.f32 %v700, 1.442695
      %v721 = vpow.pop %v720
      %v722 = vmul.f32 %v701, 1.442695
      %v723 = vpow.pop %v722
      %v724 = vmul.f32 %v702, 1.442695
      %v725 = vpow.pop %v724
      %v726 = vmul.f32 %v703, 1.442695
      %v727 = vpow.pop %v726
      %v728 = vmul.f32 %v704, 1.442695
      %v729 = vpow.pop %v728
      %v730 = vmul.f32 %v705, 1.442695
      %v731 = vpow.pop %v730
      %v732 = vmul.f32 %v706, 1.442695
      %v733 = vpow.pop %v732
      %v734 = vmul.f32 %v707, 1.442695
      %v735 = vpow.pop %v734
      %v736 = vmul.f32 %v708, 1.442695
      %v737 = vpow.pop %v736
      %v738 = vmul.f32 %v709, 1.442695
      %v739 = vpow.pop %v738
      %v740 = vmul.f32 %v710, 1.442695
      %v741 = vpow.pop %v740
      %v742 = vmul.f32 %v711, 1.442695
      %v743 = vpow.pop %v742
      %744 = vadd.xlane.f32.xlu0 %v713
      %v745 = vpop.xlane.xlu0 %744
      %746 = vadd.xlane.f32.xlu0 %v715
      %v747 = vpop.xlane.xlu0 %746
      %748 = vadd.xlane.f32.xlu0 %v717
      %v749 = vpop.xlane.xlu0 %748
      %750 = vadd.xlane.f32.xlu0 %v719
      %v751 = vpop.xlane.xlu0 %750
      %752 = vadd.xlane.f32.xlu0 %v721
      %v753 = vpop.xlane.xlu0 %752
      %754 = vadd.xlane.f32.xlu0 %v723
      %v755 = vpop.xlane.xlu0 %754
      %756 = vadd.xlane.f32.xlu0 %v725
      %v757 = vpop.xlane.xlu0 %756
      %758 = vadd.xlane.f32.xlu0 %v727
      %v759 = vpop.xlane.xlu0 %758
      %760 = vadd.xlane.f32.xlu0 %v729
      %v761 = vpop.xlane.xlu0 %760
      %762 = vadd.xlane.f32.xlu0 %v731
      %v763 = vpop.xlane.xlu0 %762
      %764 = vadd.xlane.f32.xlu0 %v733
      %v765 = vpop.xlane.xlu0 %764
      %766 = vadd.xlane.f32.xlu0 %v735
      %v767 = vpop.xlane.xlu0 %766
      %768 = vadd.xlane.f32.xlu0 %v737
      %v769 = vpop.xlane.xlu0 %768
      %770 = vadd.xlane.f32.xlu0 %v739
      %v771 = vpop.xlane.xlu0 %770
      %772 = vadd.xlane.f32.xlu0 %v741
      %v773 = vpop.xlane.xlu0 %772
      %774 = vadd.xlane.f32.xlu0 %v743
      %v775 = vpop.xlane.xlu0 %774
      %v776 = vrcp.pop %v745
      %v777 = vmul.f32 %v713, %v776
      %v778 = vrcp.pop %v747
      %v779 = vmul.f32 %v715, %v778
      %v780 = vrcp.pop %v749
      %v781 = vmul.f32 %v717, %v780
      %v782 = vrcp.pop %v751
      %v783 = vmul.f32 %v719, %v782
      %v784 = vrcp.pop %v753
      %v785 = vmul.f32 %v721, %v784
      %v786 = vrcp.pop %v755
      %v787 = vmul.f32 %v723, %v786
      %v788 = vrcp.pop %v757
      %v789 = vmul.f32 %v725, %v788
      %v790 = vrcp.pop %v759
      %v791 = vmul.f32 %v727, %v790
      %v792 = vrcp.pop %v761
      %v793 = vmul.f32 %v729, %v792
      %v794 = vrcp.pop %v763
      %v795 = vmul.f32 %v731, %v794
      %v796 = vrcp.pop %v765
      %v797 = vmul.f32 %v733, %v796
      %v798 = vrcp.pop %v767
      %v799 = vmul.f32 %v735, %v798
      %v800 = vrcp.pop %v769
      %v801 = vmul.f32 %v737, %v800
      %v802 = vrcp.pop %v771
      %v803 = vmul.f32 %v739, %v802
      %v804 = vrcp.pop %v773
      %v805 = vmul.f32 %v741, %v804
      %v806 = vrcp.pop %v775
      %v807 = vmul.f32 %v743, %v806
      %808 = vmatprep.subr.mxu0 0.0
      %809 = vmatpush1.msra.mxu0 %v360
      %810 = vmatprep.subr.mxu0 0.0
      %811 = vmatpush1.msra.mxu0 %v365
      %812 = vmatprep.subr.mxu0 0.0
      %813 = vmatpush1.msra.mxu0 %v370
      %814 = vmatprep.subr.mxu0 0.0
      %815 = vmatpush1.msra.mxu0 %v375
      %816 = vmatprep.subr.mxu0 0.0
      %817 = vmatpush1.msra.mxu0 %v380
      %818 = vmatprep.subr.mxu0 0.0
      %819 = vmatpush1.msra.mxu0 %v385
      %820 = vmatprep.subr.mxu0 0.0
      %821 = vmatpush1.msra.mxu0 %v390
      %822 = vmatprep.subr.mxu0 0.0
      %823 = vmatpush1.msra.mxu0 %v395
      %824 = vmatprep.subr.mxu0 0.0
      %825 = vmatpush1.msra.mxu0 %v400
      %826 = vmatprep.subr.mxu0 0.0
      %827 = vmatpush1.msra.mxu0 %v405
      %828 = vmatprep.subr.mxu0 0.0
      %829 = vmatpush1.msra.mxu0 %v410
      %830 = vmatprep.subr.mxu0 0.0
      %831 = vmatpush1.msra.mxu0 %v415
      %832 = vmatprep.subr.mxu0 0.0
      %833 = vmatpush1.msra.mxu0 %v420
      %834 = vmatprep.subr.mxu0 0.0
      %835 = vmatpush1.msra.mxu0 %v425
      %836 = vmatprep.subr.mxu0 0.0
      %837 = vmatpush1.msra.mxu0 %v430
      %838 = vmatprep.subr.mxu0 0.0
      %839 = vmatpush1.msra.mxu0 %v435
      %840 = vmatprep.subr.mxu0 0.0
      %841 = vmatpush1.msra.mxu0 0.0
      %842 = vmatprep.subr.mxu0 0.0
      %843 = vmatpush1.msra.mxu0 0.0
      %844 = vmatprep.subr.mxu0 0.0
      %845 = vmatpush1.msra.mxu0 0.0
      %846 = vmatprep.subr.mxu0 0.0
      %847 = vmatpush1.msra.mxu0 0.0
      %848 = vmatprep.subr.mxu0 0.0
      %849 = vmatpush1.msra.mxu0 0.0
      %850 = vmatprep.subr.mxu0 0.0
      %851 = vmatpush1.msra.mxu0 0.0
      %852 = vmatprep.subr.mxu0 0.0
      %853 = vmatpush1.msra.mxu0 0.0
      %854 = vmatprep.subr.mxu0 0.0
      %855 = vmatpush1.msra.mxu0 0.0
      %856 = vmatprep.subr.mxu0 0.0
      %857 = vmatpush1.msra.mxu0 0.0
      %858 = vmatprep.subr.mxu0 0.0
      %859 = vmatpush1.msra.mxu0 0.0
      %860 = vmatprep.subr.mxu0 0.0
      %861 = vmatpush1.msra.mxu0 0.0
      %862 = vmatprep.subr.mxu0 0.0
      %863 = vmatpush1.msra.mxu0 0.0
      %864 = vmatprep.subr.mxu0 0.0
      %865 = vmatpush1.msra.mxu0 0.0
      %866 = vmatprep.subr.mxu0 0.0
      %867 = vmatpush1.msra.mxu0 0.0
      %868 = vmatprep.subr.mxu0 0.0
      %869 = vmatpush1.msra.mxu0 0.0
      %870 = vmatprep.subr.mxu0 0.0
      %871 = vmatpush1.msra.mxu0 0.0
      %872 = vmatprep.mubr.f32.mxu0 0.0
      %873 = vmatmul.mubr.f32.gmra.mrb[0].mxu0 %v777
      %v874 = vpop.f32.mrb[0].mxu0
      %v875 = vadd.f32 0.0, %v874
      %v876 = vpop.f32.mrb[0].mxu0
      %877 = vmatprep.mubr.f32.mxu0 0.0
      %878 = vmatmul.mubr.f32.gmra.mrb[0].mxu0 %v779
      %v879 = vpop.f32.mrb[0].mxu0
      %v880 = vadd.f32 0.0, %v879
      %v881 = vpop.f32.mrb[0].mxu0
      %882 = vmatprep.mubr.f32.mxu0 0.0
      %883 = vmatmul.mubr.f32.gmra.mrb[0].mxu0 %v781
      %v884 = vpop.f32.mrb[0].mxu0
      %v885 = vadd.f32 0.0, %v884
      %v886 = vpop.f32.mrb[0].mxu0
      %887 = vmatprep.mubr.f32.mxu0 0.0
      %888 = vmatmul.mubr.f32.gmra.mrb[0].mxu0 %v783
      %v889 = vpop.f32.mrb[0].mxu0
      %v890 = vadd.f32 0.0, %v889
      %v891 = vpop.f32.mrb[0].mxu0
      %892 = vmatprep.mubr.f32.mxu0 0.0
      %893 = vmatmul.mubr.f32.gmra.mrb[0].mxu0 %v785
      %v894 = vpop.f32.mrb[0].mxu0
      %v895 = vadd.f32 0.0, %v894
      %v896 = vpop.f32.mrb[0].mxu0
      %897 = vmatprep.mubr.f32.mxu0 0.0
      %898 = vmatmul.mubr.f32.gmra.mrb[0].mxu0 %v787
      %v899 = vpop.f32.mrb[0].mxu0
      %v900 = vadd.f32 0.0, %v899
      %v901 = vpop.f32.mrb[0].mxu0
      %902 = vmatprep.mubr.f32.mxu0 0.0
      %903 = vmatmul.mubr.f32.gmra.mrb[0].mxu0 %v789
      %v904 = vpop.f32.mrb[0].mxu0
      %v905 = vadd.f32 0.0, %v904
      %v906 = vpop.f32.mrb[0].mxu0
      %907 = vmatprep.mubr.f32.mxu0 0.0
      %908 = vmatmul.mubr.f32.gmra.mrb[0].mxu0 %v791
      %v909 = vpop.f32.mrb[0].mxu0
      %v910 = vadd.f32 0.0, %v909
      %v911 = vpop.f32.mrb[0].mxu0
      %912 = vmatprep.mubr.f32.mxu0 0.0
      %913 = vmatmul.mubr.f32.gmra.mrb[0].mxu0 %v793
      %v914 = vpop.f32.mrb[0].mxu0
      %v915 = vadd.f32 0.0, %v914
      %v916 = vpop.f32.mrb[0].mxu0
      %917 = vmatprep.mubr.f32.mxu0 0.0
      %918 = vmatmul.mubr.f32.gmra.mrb[0].mxu0 %v795
      %v919 = vpop.f32.mrb[0].mxu0
      %v920 = vadd.f32 0.0, %v919
      %v921 = vpop.f32.mrb[0].mxu0
      %922 = vmatprep.mubr.f32.mxu0 0.0
      %923 = vmatmul.mubr.f32.gmra.mrb[0].mxu0 %v797
      %v924 = vpop.f32.mrb[0].mxu0
      %v925 = vadd.f32 0.0, %v924
      %v926 = vpop.f32.mrb[0].mxu0
      %927 = vmatprep.mubr.f32.mxu0 0.0
      %928 = vmatmul.mubr.f32.gmra.mrb[0].mxu0 %v799
      %v929 = vpop.f32.mrb[0].mxu0
      %v930 = vadd.f32 0.0, %v929
      %v931 = vpop.f32.mrb[0].mxu0
      %932 = vmatprep.mubr.f32.mxu0 0.0
      %933 = vmatmul.mubr.f32.gmra.mrb[0].mxu0 %v801
      %v934 = vpop.f32.mrb[0].mxu0
      %v935 = vadd.f32 0.0, %v934
      %v936 = vpop.f32.mrb[0].mxu0
      %937 = vmatprep.mubr.f32.mxu0 0.0
      %938 = vmatmul.mubr.f32.gmra.mrb[0].mxu0 %v803
      %v939 = vpop.f32.mrb[0].mxu0
      %v940 = vadd.f32 0.0, %v939
      %v941 = vpop.f32.mrb[0].mxu0
      %942 = vmatprep.mubr.f32.mxu0 0.0
      %943 = vmatmul.mubr.f32.gmra.mrb[0].mxu0 %v805
      %v944 = vpop.f32.mrb[0].mxu0
      %v945 = vadd.f32 0.0, %v944
      %v946 = vpop.f32.mrb[0].mxu0
      %947 = vmatprep.mubr.f32.mxu0 0.0
      %948 = vmatmul.mubr.f32.gmra.mrb[0].mxu0 %v807
      %v949 = vpop.f32.mrb[0].mxu0
      %v950 = vadd.f32 0.0, %v949
      %v951 = vpop.f32.mrb[0].mxu0
      %952 = vdwg.mxu0
      %vm953 = vcmp.gt.f32.partialorder %v875, 0.0
      %vm954 = vcmp.gt.f32.partialorder %v880, 0.0
      %vm955 = vcmp.gt.f32.partialorder %v885, 0.0
      %vm956 = vcmp.gt.f32.partialorder %v890, 0.0
      %vm957 = vcmp.gt.f32.partialorder %v895, 0.0
      %vm958 = vcmp.gt.f32.partialorder %v900, 0.0
      %vm959 = vcmp.gt.f32.partialorder %v905, 0.0
      %vm960 = vcmp.gt.f32.partialorder %v910, 0.0
      %vm961 = vcmp.gt.f32.partialorder %v915, 0.0
      %vm962 = vcmp.gt.f32.partialorder %v920, 0.0
      %vm963 = vcmp.gt.f32.partialorder %v925, 0.0
      %vm964 = vcmp.gt.f32.partialorder %v930, 0.0
      %vm965 = vcmp.gt.f32.partialorder %v935, 0.0
      %vm966 = vcmp.gt.f32.partialorder %v940, 0.0
      %vm967 = vcmp.gt.f32.partialorder %v945, 0.0
      %vm968 = vcmp.gt.f32.partialorder %v950, 0.0
      %v969 = vmul.f32 %v875, 1.442695
      %v970 = vpow.pop %v969
      %v971 = vmul.f32 %v880, 1.442695
      %v972 = vpow.pop %v971
      %v973 = vmul.f32 %v885, 1.442695
      %v974 = vpow.pop %v973
      %v975 = vmul.f32 %v890, 1.442695
      %v976 = vpow.pop %v975
      %v977 = vmul.f32 %v895, 1.442695
      %v978 = vpow.pop %v977
      %v979 = vmul.f32 %v900, 1.442695
      %v980 = vpow.pop %v979
      %v981 = vmul.f32 %v905, 1.442695
      %v982 = vpow.pop %v981
      %v983 = vmul.f32 %v910, 1.442695
      %v984 = vpow.pop %v983
      %v985 = vmul.f32 %v915, 1.442695
      %v986 = vpow.pop %v985
      %v987 = vmul.f32 %v920, 1.442695
      %v988 = vpow.pop %v987
      %v989 = vmul.f32 %v925, 1.442695
      %v990 = vpow.pop %v989
      %v991 = vmul.f32 %v930, 1.442695
      %v992 = vpow.pop %v991
      %v993 = vmul.f32 %v935, 1.442695
      %v994 = vpow.pop %v993
      %v995 = vmul.f32 %v940, 1.442695
      %v996 = vpow.pop %v995
      %v997 = vmul.f32 %v945, 1.442695
      %v998 = vpow.pop %v997
      %v999 = vmul.f32 %v950, 1.442695
      %v1000 = vpow.pop %v999
      %v1001 = vsub.f32 %v970, 1.0
      %v1002 = vsub.f32 %v972, 1.0
      %v1003 = vsub.f32 %v974, 1.0
      %v1004 = vsub.f32 %v976, 1.0
      %v1005 = vsub.f32 %v978, 1.0
      %v1006 = vsub.f32 %v980, 1.0
      %v1007 = vsub.f32 %v982, 1.0
      %v1008 = vsub.f32 %v984, 1.0
      %v1009 = vsub.f32 %v986, 1.0
      %v1010 = vsub.f32 %v988, 1.0
      %v1011 = vsub.f32 %v990, 1.0
      %v1012 = vsub.f32 %v992, 1.0
      %v1013 = vsub.f32 %v994, 1.0
      %v1014 = vsub.f32 %v996, 1.0
      %v1015 = vsub.f32 %v998, 1.0
      %v1016 = vsub.f32 %v1000, 1.0
      %v1017 = vsel %vm953, %v875, %v1001
      %v1018 = vsel %vm954, %v880, %v1002
      %v1019 = vsel %vm955, %v885, %v1003
      %v1020 = vsel %vm956, %v890, %v1004
      %v1021 = vsel %vm957, %v895, %v1005
      %v1022 = vsel %vm958, %v900, %v1006
      %v1023 = vsel %vm959, %v905, %v1007
      %v1024 = vsel %vm960, %v910, %v1008
      %v1025 = vsel %vm961, %v915, %v1009
      %v1026 = vsel %vm962, %v920, %v1010
      %v1027 = vsel %vm963, %v925, %v1011
      %v1028 = vsel %vm964, %v930, %v1012
      %v1029 = vsel %vm965, %v935, %v1013
      %v1030 = vsel %vm966, %v940, %v1014
      %v1031 = vsel %vm967, %v945, %v1015
      %v1032 = vsel %vm968, %v950, %v1016
      %1033 = vst [vmem:[%s244] sm:$0xff] %v1017
      %1034 = vst [vmem:[%s244 + $0x8] sm:$0xff] %v1018
      %1035 = vst [vmem:[%s244 + $0x10] sm:$0xff] %v1019
      %1036 = vst [vmem:[%s244 + $0x18] sm:$0xff] %v1020
      %1037 = vst [vmem:[%s244 + $0x20] sm:$0xff] %v1021
      %1038 = vst [vmem:[%s244 + $0x28] sm:$0xff] %v1022
      %1039 = vst [vmem:[%s244 + $0x30] sm:$0xff] %v1023
      %1040 = vst [vmem:[%s244 + $0x38] sm:$0xff] %v1024
      %1041 = vst [vmem:[%s244 + $0x40] sm:$0xff] %v1025
      %1042 = vst [vmem:[%s244 + $0x48] sm:$0xff] %v1026
      %1043 = vst [vmem:[%s244 + $0x50] sm:$0xff] %v1027
      %1044 = vst [vmem:[%s244 + $0x58] sm:$0xff] %v1028
      %1045 = vst [vmem:[%s244 + $0x60] sm:$0xff] %v1029
      %1046 = vst [vmem:[%s244 + $0x68] sm:$0xff] %v1030
      %1047 = vst [vmem:[%s244 + $0x70] sm:$0xff] %v1031
      %1048 = vst [vmem:[%s244 + $0x78] sm:$0xff] %v1032
      %p1049 = scmp.lt.s32.totalorder %s16, 1
      %s1050 = scalar_select %p1049, %s16, 1
      %s1051 = smul.addr %s1050, 16
      %s1052 = smul.addr %s1051, 8
      %s1053 = scalar_lea.vmem %s5, %s1052
      // Predicated region
      $region41: #{gat_forward.6} parent=39 // pred_check
        %p1054 = pneg %p149
      $region42: #{gat_forward.6} parent=39 // pred_check_branch
        %1056 = sbr.rel (%p1054) target = $region44
      $region43: #{gat_forward.6} parent=39 // pred_region
        _
      $region44: #{gat_forward.6} parent=39 // pred_fallthru
        _
    $region40: #{gat_forward.6} parent=5 // pred_fallthru
      _
    %p1057 = scmp.le.s32.totalorder 2, %s11
    // Predicated region
    $region45: #{gat_forward.6} parent=5 // pred_check
      %p1058 = pneg %p1057
    $region46: #{gat_forward.6} parent=5 // pred_check_branch
      %1060 = sbr.rel (%p1058) target = $region48
    $region47: #{gat_forward.6} parent=5 // pred_region
      %s1061 = ssub.s32 %s11, 2
      // Predicated region
      $region49: #{gat_forward.6} parent=47 // pred_check
        %p1062 = pneg %p155
      $region50: #{gat_forward.6} parent=47 // pred_check_branch
        %1064 = sbr.rel (%p1062) target = $region52
      $region51: #{gat_forward.6} parent=47 // pred_region
        %p1065 = scmp.lt.s32.totalorder %s17, 1
        %s1066 = scalar_select %p1065, %s17, 1
        %s1067 = smul.addr %s1066, 16
        %s1068 = smul.addr %s1067, 8
        %s1069 = scalar_lea.vmem %s5, %s1068
      $region52: #{gat_forward.6} parent=47 // pred_fallthru
        _
    $region48: #{gat_forward.6} parent=5 // pred_fallthru
      _
  $region6: #{gat_forward.6} parent=0 // loop_footer
    %s15 = sadd.s32 1, %s11
  $region7: #{gat_forward.6} parent=0 // loop_footer_branch
    %10 = sbr.rel target = $region3
  $region8: #{gat_forward.6} parent=0 // loop_exit
    _

// kernel: gat_forward.8
$region0: #{gat_forward.8}
  #allocation0 [shape = 'u32[]', space=smem, size = 0x4, offset = 0x4, fixed_abs, tag = 'smem constant byte address 0x4 - core index']
  #allocation1 [shape = 'u32[144,128]{1,0:T(1,128)}', space=vmem, size = 0x12000, scoped, tag = 'internal scratch']
  %s0 = inlined_call_operand.vmem [shape: f32[56,128], index: 0, kind: input, shape index: {}]
  %s1 = inlined_call_operand.vmem [shape: f32[128,128], index: 1, kind: input, shape index: {}]
  %s2 = inlined_call_operand.vmem [shape: f32[1,128], index: 2, kind: input, shape index: {}]
  %s3 = inlined_call_operand.vmem [shape: f32[56,128], index: 3, kind: output, shape index: {}]
  %s4 = sld [smem:[#allocation0]]
  $region22: #{gat_forward.8} parent=0
    _
  %s6 = ssub.s32 1, %s4
  %s7 = scalar_select 0, %s6, %s4
  // Predicated region
  $region2: #{gat_forward.8} parent=0 // pred_check
    _
  $region3: #{gat_forward.8} parent=0 // pred_check_branch
    %9 = sbr.rel (0) target = $region5
  $region4: #{gat_forward.8} parent=0 // pred_region
    _
  $region5: #{gat_forward.8} parent=0 // pred_fallthru
    _
  // Predicated region
  $region6: #{gat_forward.8} parent=0 // pred_check
    _
  $region7: #{gat_forward.8} parent=0 // pred_check_branch
    %11 = sbr.rel (0) target = $region9
  $region8: #{gat_forward.8} parent=0 // pred_region
    _
  $region9: #{gat_forward.8} parent=0 // pred_fallthru
    _
  // Predicated region
  $region10: #{gat_forward.8} parent=0 // pred_check
    _
  $region11: #{gat_forward.8} parent=0 // pred_check_branch
    %13 = sbr.rel (0) target = $region13
  $region12: #{gat_forward.8} parent=0 // pred_region
    _
  $region13: #{gat_forward.8} parent=0 // pred_fallthru
    _
  %v14 = vld [vmem:[%s0] sm:$0xff]
  %v15 = vld [vmem:[%s0 + $0x8] sm:$0xff]
  %v16 = vld [vmem:[%s0 + $0x10] sm:$0xff]
  %v17 = vld [vmem:[%s0 + $0x18] sm:$0xff]
  %v18 = vld [vmem:[%s0 + $0x20] sm:$0xff]
  %v19 = vld [vmem:[%s0 + $0x28] sm:$0xff]
  %v20 = vld [vmem:[%s0 + $0x30] sm:$0xff]
  %v21 = vld [vmem:[%s1] sm:$0xff]
  %v22 = vld [vmem:[%s1 + $0x8] sm:$0xff]
  %v23 = vld [vmem:[%s1 + $0x10] sm:$0xff]
  %v24 = vld [vmem:[%s1 + $0x18] sm:$0xff]
  %v25 = vld [vmem:[%s1 + $0x20] sm:$0xff]
  %v26 = vld [vmem:[%s1 + $0x28] sm:$0xff]
  %v27 = vld [vmem:[%s1 + $0x30] sm:$0xff]
  %v28 = vld [vmem:[%s1 + $0x38] sm:$0xff]
  %v29 = vld [vmem:[%s1 + $0x40] sm:$0xff]
  %v30 = vld [vmem:[%s1 + $0x48] sm:$0xff]
  %v31 = vld [vmem:[%s1 + $0x50] sm:$0xff]
  %v32 = vld [vmem:[%s1 + $0x58] sm:$0xff]
  %v33 = vld [vmem:[%s1 + $0x60] sm:$0xff]
  %v34 = vld [vmem:[%s1 + $0x68] sm:$0xff]
  %v35 = vld [vmem:[%s1 + $0x70] sm:$0xff]
  %v36 = vld [vmem:[%s1 + $0x78] sm:$0xff]
  %v37 = vld [vmem:[%s2] sm:$0x1]
  %v39 = vlaneseq
  %v40 = vshrl.u32 %v39, 7
  %v41 = vsub.s32 0, %v40
  %v42 = vrot.slane %v37, %v41
  %44 = vmatprep.subr.mxu0 0.0
  %45 = vmatpush1.msra.mxu0 %v21
  %46 = vmatprep.subr.mxu0 0.0
  %47 = vmatpush1.msra.mxu0 %v22
  %48 = vmatprep.subr.mxu0 0.0
  %49 = vmatpush1.msra.mxu0 %v23
  %50 = vmatprep.subr.mxu0 0.0
  %51 = vmatpush1.msra.mxu0 %v24
  %52 = vmatprep.subr.mxu0 0.0
  %53 = vmatpush1.msra.mxu0 %v25
  %54 = vmatprep.subr.mxu0 0.0
  %55 = vmatpush1.msra.mxu0 %v26
  %56 = vmatprep.subr.mxu0 0.0
  %57 = vmatpush1.msra.mxu0 %v27
  %58 = vmatprep.subr.mxu0 0.0
  %59 = vmatpush1.msra.mxu0 %v28
  %60 = vmatprep.subr.mxu0 0.0
  %61 = vmatpush1.msra.mxu0 %v29
  %62 = vmatprep.subr.mxu0 0.0
  %63 = vmatpush1.msra.mxu0 %v30
  %64 = vmatprep.subr.mxu0 0.0
  %65 = vmatpush1.msra.mxu0 %v31
  %66 = vmatprep.subr.mxu0 0.0
  %67 = vmatpush1.msra.mxu0 %v32
  %68 = vmatprep.subr.mxu0 0.0
  %69 = vmatpush1.msra.mxu0 %v33
  %70 = vmatprep.subr.mxu0 0.0
  %71 = vmatpush1.msra.mxu0 %v34
  %72 = vmatprep.subr.mxu0 0.0
  %73 = vmatpush1.msra.mxu0 %v35
  %74 = vmatprep.subr.mxu0 0.0
  %75 = vmatpush1.msra.mxu0 %v36
  %76 = vmatprep.subr.mxu0 0.0
  %77 = vmatpush1.msra.mxu0 0.0
  %78 = vmatprep.subr.mxu0 0.0
  %79 = vmatpush1.msra.mxu0 0.0
  %80 = vmatprep.subr.mxu0 0.0
  %81 = vmatpush1.msra.mxu0 0.0
  %82 = vmatprep.subr.mxu0 0.0
  %83 = vmatpush1.msra.mxu0 0.0
  %84 = vmatprep.subr.mxu0 0.0
  %85 = vmatpush1.msra.mxu0 0.0
  %86 = vmatprep.subr.mxu0 0.0
  %87 = vmatpush1.msra.mxu0 0.0
  %88 = vmatprep.subr.mxu0 0.0
  %89 = vmatpush1.msra.mxu0 0.0
  %90 = vmatprep.subr.mxu0 0.0
  %91 = vmatpush1.msra.mxu0 0.0
  %92 = vmatprep.subr.mxu0 0.0
  %93 = vmatpush1.msra.mxu0 0.0
  %94 = vmatprep.subr.mxu0 0.0
  %95 = vmatpush1.msra.mxu0 0.0
  %96 = vmatprep.subr.mxu0 0.0
  %97 = vmatpush1.msra.mxu0 0.0
  %98 = vmatprep.subr.mxu0 0.0
  %99 = vmatpush1.msra.mxu0 0.0
  %100 = vmatprep.subr.mxu0 0.0
  %101 = vmatpush1.msra.mxu0 0.0
  %102 = vmatprep.subr.mxu0 0.0
  %103 = vmatpush1.msra.mxu0 0.0
  %104 = vmatprep.subr.mxu0 0.0
  %105 = vmatpush1.msra.mxu0 0.0
  %106 = vmatprep.subr.mxu0 0.0
  %107 = vmatpush1.msra.mxu0 0.0
  %108 = vmatprep.mubr.f32.mxu0 0.0
  %109 = vmatmul.mubr.f32.gmra.mrb[0].mxu0 %v14
  %v110 = vpop.f32.mrb[0].mxu0
  %v111 = vadd.f32 %v42, %v110
  %v112 = vpop.f32.mrb[0].mxu0
  %113 = vmatprep.mubr.f32.mxu0 0.0
  %114 = vmatmul.mubr.f32.gmra.mrb[0].mxu0 %v15
  %v115 = vpop.f32.mrb[0].mxu0
  %v116 = vadd.f32 %v42, %v115
  %v117 = vpop.f32.mrb[0].mxu0
  %118 = vmatprep.mubr.f32.mxu0 0.0
  %119 = vmatmul.mubr.f32.gmra.mrb[0].mxu0 %v16
  %v120 = vpop.f32.mrb[0].mxu0
  %v121 = vadd.f32 %v42, %v120
  %v122 = vpop.f32.mrb[0].mxu0
  %123 = vmatprep.mubr.f32.mxu0 0.0
  %124 = vmatmul.mubr.f32.gmra.mrb[0].mxu0 %v17
  %v125 = vpop.f32.mrb[0].mxu0
  %v126 = vadd.f32 %v42, %v125
  %v127 = vpop.f32.mrb[0].mxu0
  %128 = vmatprep.mubr.f32.mxu0 0.0
  %129 = vmatmul.mubr.f32.gmra.mrb[0].mxu0 %v18
  %v130 = vpop.f32.mrb[0].mxu0
  %v131 = vadd.f32 %v42, %v130
  %v132 = vpop.f32.mrb[0].mxu0
  %133 = vmatprep.mubr.f32.mxu0 0.0
  %134 = vmatmul.mubr.f32.gmra.mrb[0].mxu0 %v19
  %v135 = vpop.f32.mrb[0].mxu0
  %v136 = vadd.f32 %v42, %v135
  %v137 = vpop.f32.mrb[0].mxu0
  %138 = vmatprep.mubr.f32.mxu0 0.0
  %139 = vmatmul.mubr.f32.gmra.mrb[0].mxu0 %v20
  %v140 = vpop.f32.mrb[0].mxu0
  %v141 = vadd.f32 %v42, %v140
  %v142 = vpop.f32.mrb[0].mxu0
  %143 = vdwg.mxu0
  %144 = vst [vmem:[%s3] sm:$0xff] %v111
  %145 = vst [vmem:[%s3 + $0x8] sm:$0xff] %v116
  %146 = vst [vmem:[%s3 + $0x10] sm:$0xff] %v121
  %147 = vst [vmem:[%s3 + $0x18] sm:$0xff] %v126
  %148 = vst [vmem:[%s3 + $0x20] sm:$0xff] %v131
  %149 = vst [vmem:[%s3 + $0x28] sm:$0xff] %v136
  %150 = vst [vmem:[%s3 + $0x30] sm:$0xff] %v141
  // Predicated region
  $region14: #{gat_forward.8} parent=0 // pred_check
    _
  $region15: #{gat_forward.8} parent=0 // pred_check_branch
    %152 = sbr.rel (0) target = $region17
  $region16: #{gat_forward.8} parent=0 // pred_region
    _
  $region17: #{gat_forward.8} parent=0 // pred_fallthru
    _
  // Predicated region
  $region18: #{gat_forward.8} parent=0 // pred_check
    _
  $region19: #{gat_forward.8} parent=0 // pred_check_branch
    %154 = sbr.rel (0) target = $region21
  $region20: #{gat_forward.8} parent=0 // pred_region
    _
  $region21: #{gat_forward.8} parent=0 // pred_fallthru
    _

// kernel: gat_forward.9
$region0: #{gat_forward.9}
  #allocation0 [shape = 'u32[]', space=smem, size = 0x4, offset = 0x4, fixed_abs, tag = 'smem constant byte address 0x4 - core index']
  #allocation1 [shape = 'u32[144,128]{1,0:T(1,128)}', space=vmem, size = 0x12000, scoped, tag = 'internal scratch']
  %s0 = inlined_call_operand.vmem [shape: f32[2,4,15,15], index: 0, kind: input, shape index: {}]
  %s1 = inlined_call_operand.vmem [shape: f32[16,15], index: 1, kind: input, shape index: {}]
  %s2 = inlined_call_operand.vmem [shape: f32[15,16], index: 2, kind: input, shape index: {}]
  %s3 = inlined_call_operand.vmem [shape: f32[2,4,16,16], index: 3, kind: input, shape index: {}]
  %s4 = inlined_call_operand.hbm [shape: f32[2,4,16,16], index: 4, kind: output, shape index: {}]
  %s5 = sld [smem:[#allocation0]]
  $region49: #{gat_forward.9} parent=0
    _
  %s7 = ssub.s32 1, %s5
  %s8 = scalar_select 0, %s7, %s5
  $region1: #{gat_forward.9} parent=0
    #allocation2 [shape = 'u8[65536]{0}', space=vmem, size = 0x10000, scoped, tag = 'output window, operand 0']
    #allocation3 [shape = 's32[2]{0}', space=sflag, size = 0x8, scoped, tag = 'scoped memory for gat_forward.9']
    %9 = vsyncpa [#allocation3], 0
    %s10 = scalar_lea.sflag [#allocation3], 1
    %11 = vsyncpa %s10, 0
    loop: start=0, step=1, limit=4
    $region2: #{gat_forward.9} parent=1 // loop_pre_header
      _
    $region3: #{gat_forward.9} parent=1 // loop_header
      %s13 = sphi 0, %s17
      %p14 = scmp.ge.s32.totalorder %s13, 4
      %s23 = sphi 0, %s25
      %s26 = sphi 0, %s23
      %s27 = sphi 0, %s26
      %s43 = sphi 0, %s27
      %s47 = sphi 0, %s47
      %s49 = sphi 0, %s47
      %s50 = sphi 0, %s49
      %s64 = sphi 0, %s50
      %s68 = sphi 0, %s68
      %s70 = sphi 0, %s68
      %s71 = sphi 0, %s70
      %s85 = sphi 0, %s71
      %s91 = sphi 0, %s93
      %s94 = sphi 0, %s91
      %s95 = sphi 0, %s94
      %s111 = sphi 0, %s95
      %s117 = sphi 0, %s119
      %s120 = sphi 0, %s117
      %s121 = sphi 0, %s120
      %s137 = sphi 0, %s121
    $region4: #{gat_forward.9} parent=1 // loop_header_branch
      %16 = sbr.rel (%p14) target = $region8
    $region5: #{gat_forward.9} parent=1 // loop_body
      %s18 = ssub.s32 %s13, 1
      %s19 = ssub.s32 %s13, 2
      %s20 = sadd.s32 %s13, 1
      %s21 = ssub.s32 %s13, %s20
      %p22 = scmp.eq.s32.totalorder %s21, 0
      %s24 = sadd.s32 %s23, 1
      %s25 = scalar_select %p22, %s23, %s24
      %p28 = pneg %p22
      %p29 = scmp.eq.s32.totalorder %s13, 1
      %p30 = por %p28, %p29
      %p31 = scmp.ne.s32.totalorder %s23, %s26
      %p32 = scmp.eq.s32.totalorder %s13, 0
      %p33 = por %p31, %p32
      %p34 = scmp.ne.s32.totalorder %s23, %s26
      %p35 = scmp.eq.s32.totalorder %s18, 1
      %p36 = por %p34, %p35
      %p37 = scmp.ne.s32.totalorder %s26, %s27
      %p38 = scmp.eq.s32.totalorder %s18, 0
      %p39 = por %p37, %p38
      %p40 = scmp.ne.s32.totalorder %s26, %s27
      %p41 = scmp.eq.s32.totalorder %s19, 1
      %p42 = por %p40, %p41
      %p44 = scmp.ne.s32.totalorder %s27, %s43
      %p45 = scmp.eq.s32.totalorder %s19, 0
      %p46 = por %p44, %p45
      %s48 = sadd.s32 %s47, 1
      %p51 = scmp.eq.s32.totalorder %s13, 1
      %p52 = scmp.ne.s32.totalorder %s47, %s49
      %p53 = scmp.eq.s32.totalorder %s13, 0
      %p54 = por %p52, %p53
      %p55 = scmp.ne.s32.totalorder %s47, %s49
      %p56 = scmp.eq.s32.totalorder %s18, 1
      %p57 = por %p55, %p56
      %p58 = scmp.ne.s32.totalorder %s49, %s50
      %p59 = scmp.eq.s32.totalorder %s18, 0
      %p60 = por %p58, %p59
      %p61 = scmp.ne.s32.totalorder %s49, %s50
      %p62 = scmp.eq.s32.totalorder %s19, 1
      %p63 = por %p61, %p62
      %p65 = scmp.ne.s32.totalorder %s50, %s64
      %p66 = scmp.eq.s32.totalorder %s19, 0
      %p67 = por %p65, %p66
      %s69 = sadd.s32 %s68, 1
      %p72 = scmp.eq.s32.totalorder %s13, 1
      %p73 = scmp.ne.s32.totalorder %s68, %s70
      %p74 = scmp.eq.s32.totalorder %s13, 0
      %p75 = por %p73, %p74
      %p76 = scmp.ne.s32.totalorder %s68, %s70
      %p77 = scmp.eq.s32.totalorder %s18, 1
      %p78 = por %p76, %p77
      %p79 = scmp.ne.s32.totalorder %s70, %s71
      %p80 = scmp.eq.s32.totalorder %s18, 0
      %p81 = por %p79, %p80
      %p82 = scmp.ne.s32.totalorder %s70, %s71
      %p83 = scmp.eq.s32.totalorder %s19, 1
      %p84 = por %p82, %p83
      %p86 = scmp.ne.s32.totalorder %s71, %s85
      %p87 = scmp.eq.s32.totalorder %s19, 0
      %p88 = por %p86, %p87
      %s89 = ssub.s32 %s13, %s20
      %p90 = scmp.eq.s32.totalorder %s89, 0
      %s92 = sadd.s32 %s91, 1
      %s93 = scalar_select %p90, %s91, %s92
      %p96 = pneg %p90
      %p97 = scmp.eq.s32.totalorder %s13, 1
      %p98 = por %p96, %p97
      %p99 = scmp.ne.s32.totalorder %s91, %s94
      %p100 = scmp.eq.s32.totalorder %s13, 0
      %p101 = por %p99, %p100
      %p102 = scmp.ne.s32.totalorder %s91, %s94
      %p103 = scmp.eq.s32.totalorder %s18, 1
      %p104 = por %p102, %p103
      %p105 = scmp.ne.s32.totalorder %s94, %s95
      %p106 = scmp.eq.s32.totalorder %s18, 0
      %p107 = por %p105, %p106
      %p108 = scmp.ne.s32.totalorder %s94, %s95
      %p109 = scmp.eq.s32.totalorder %s19, 1
      %p110 = por %p108, %p109
      %p112 = scmp.ne.s32.totalorder %s95, %s111
      %p113 = scmp.eq.s32.totalorder %s19, 0
      %p114 = por %p112, %p113
      %s115 = ssub.s32 %s13, %s20
      %p116 = scmp.eq.s32.totalorder %s115, 0
      %s118 = sadd.s32 %s117, 1
      %s119 = scalar_select %p116, %s117, %s118
      %p122 = pneg %p116
      %p123 = scmp.eq.s32.totalorder %s13, 1
      %p124 = por %p122, %p123
      %p125 = scmp.ne.s32.totalorder %s117, %s120
      %p126 = scmp.eq.s32.totalorder %s13, 0
      %p127 = por %p125, %p126
      %p128 = scmp.ne.s32.totalorder %s117, %s120
      %p129 = scmp.eq.s32.totalorder %s18, 1
      %p130 = por %p128, %p129
      %p131 = scmp.ne.s32.totalorder %s120, %s121
      %p132 = scmp.eq.s32.totalorder %s18, 0
      %p133 = por %p131, %p132
      %p134 = scmp.ne.s32.totalorder %s120, %s121
      %p135 = scmp.eq.s32.totalorder %s19, 1
      %p136 = por %p134, %p135
      %p138 = scmp.ne.s32.totalorder %s121, %s137
      %p139 = scmp.eq.s32.totalorder %s19, 0
      %p140 = por %p138, %p139
      %p141 = scmp.le.s32.totalorder 1, %s13
      %p142 = scmp.lt.s32.totalorder %s13, 3
      %p143 = pnand %p141, %p142
      %p144 = pneg %p143
      // Predicated region
      $region9: #{gat_forward.9} parent=5 // pred_check
        _
      $region10: #{gat_forward.9} parent=5 // pred_check_branch
        %146 = sbr.rel (%p143) target = $region12
      $region11: #{gat_forward.9} parent=5 // pred_region
        %s147 = ssub.s32 %s13, 1
        // Predicated region
        $region13: #{gat_forward.9} parent=11 // pred_check
          %p148 = pneg %p60
        $region14: #{gat_forward.9} parent=11 // pred_check_branch
          %150 = sbr.rel (%p148) target = $region16
        $region15: #{gat_forward.9} parent=11 // pred_region
          _
        $region16: #{gat_forward.9} parent=11 // pred_fallthru
          _
        // Predicated region
        $region17: #{gat_forward.9} parent=11 // pred_check
          %p151 = pneg %p81
        $region18: #{gat_forward.9} parent=11 // pred_check_branch
          %153 = sbr.rel (%p151) target = $region20
        $region19: #{gat_forward.9} parent=11 // pred_region
          _
        $region20: #{gat_forward.9} parent=11 // pred_fallthru
          _
      $region12: #{gat_forward.9} parent=5 // pred_fallthru
        _
      %p154 = scmp.lt.s32.totalorder %s13, 2
      // Predicated region
      $region21: #{gat_forward.9} parent=5 // pred_check
        %p155 = pneg %p154
      $region22: #{gat_forward.9} parent=5 // pred_check_branch
        %157 = sbr.rel (%p155) target = $region24
      $region23: #{gat_forward.9} parent=5 // pred_region
        // Predicated region
        $region25: #{gat_forward.9} parent=23 // pred_check
          %p158 = pneg %p33
        $region26: #{gat_forward.9} parent=23 // pred_check_branch
          %160 = sbr.rel (%p158) target = $region28
        $region27: #{gat_forward.9} parent=23 // pred_region
          %p161 = scmp.lt.s32.totalorder %s13, 1
          %s162 = scalar_select %p161, %s13, 1
          %s163 = smul.addr %s162, 8
          %s164 = smul.addr %s163, 8
          %s165 = scalar_lea.vmem %s0, %s164
        $region28: #{gat_forward.9} parent=23 // pred_fallthru
          _
        // Predicated region
        $region29: #{gat_forward.9} parent=23 // pred_check
          %p166 = pneg %p101
        $region30: #{gat_forward.9} parent=23 // pred_check_branch
          %168 = sbr.rel (%p166) target = $region32
        $region31: #{gat_forward.9} parent=23 // pred_region
          %p169 = scmp.lt.s32.totalorder %s13, 1
          %s170 = scalar_select %p169, %s13, 1
          %s171 = smul.addr %s170, 8
          %s172 = smul.addr %s171, 8
          %s173 = scalar_lea.vmem %s3, %s172
        $region32: #{gat_forward.9} parent=23 // pred_fallthru
          _
      $region24: #{gat_forward.9} parent=5 // pred_fallthru
        _
      %p174 = scmp.le.s32.totalorder 1, %s13
      %p175 = scmp.lt.s32.totalorder %s13, 3
      %p176 = pnand %p174, %p175
      %p177 = pneg %p176
      // Predicated region
      $region33: #{gat_forward.9} parent=5 // pred_check
        _
      $region34: #{gat_forward.9} parent=5 // pred_check_branch
        %179 = sbr.rel (%p176) target = $region36
      $region35: #{gat_forward.9} parent=5 // pred_region
        %s180 = ssub.s32 %s13, 1
        %p181 = scmp.lt.s32.totalorder %s18, 1
        %s182 = scalar_select %p181, %s18, 1
        %s183 = smul.addr %s182, 8
        %s184 = smul.addr %s183, 8
        %s185 = scalar_lea.vmem %s0, %s184
        %p186 = pneg %p39
        %p187 = pneg %p36
        %p188 = pneg %p60
        %p189 = pneg %p57
        %p190 = pneg %p81
        %p191 = pneg %p78
        %p192 = scmp.lt.s32.totalorder %s18, 1
        %s193 = scalar_select %p192, %s18, 1
        %s194 = smul.addr %s193, 8
        %s195 = smul.addr %s194, 8
        %s196 = scalar_lea.vmem %s3, %s195
        %p197 = pneg %p107
        %p198 = pneg %p104
        %p199 = pneg %p133
        %p200 = pneg %p130
        %s201 = sand.u32 %s120, 1
        %s202 = scalar_lea.sflag [#allocation3], %s201
        %s203 = sand.u32 %s120, 1
        %s204 = smul.addr %s203, 64
        %s205 = scalar_lea.vmem [#allocation2], %s204
        %p206 = scmp.lt.s32.totalorder %s18, 1
        %s207 = scalar_select %p206, %s18, 1
        %s208 = smul.addr %s207, 8
        %s209 = smul.addr %s208, 8
        %s210 = scalar_lea.vmem %s0, %s209
        %p211 = scmp.lt.s32.totalorder %s18, 1
        %s212 = scalar_select %p211, %s18, 1
        %s213 = smul.addr %s212, 8
        %s214 = smul.addr %s213, 8
        %s215 = scalar_lea.vmem %s3, %s214
        %v216 = vld [vmem:[%s1] sm:$0xff]
        %v217 = vld [vmem:[%s1 + $0x8] sm:$0xff]
        %v218 = vld [vmem:[%s2] sm:$0xff]
        %v219 = vld [vmem:[%s2 + $0x8] sm:$0x7f]
        %v220 = vld [vmem:[%s210] sm:$0xff]
        %v221 = vld [vmem:[%s210 + $0x8] sm:$0x7f]
        %vm222 = vcmask 121856
        %v224 = vsel %vm222, %v220, 0
        %v227 = vsel %vm222, %v221, 0
        %vm229 = vcmask 1046528
        %v231 = vsel %vm229, %v219, 0
        %233 = vmatprep.subr.mxu0 0.0
        %234 = vmatpush1.msra.mxu0 %v218
        %235 = vmatprep.subr.mxu0 0.0
        %236 = vmatpush1.msra.mxu0 %v231
        %237 = vmatprep.subr.mxu0 0.0
        %238 = vmatpush1.msra.mxu0 0.0
        %239 = vmatprep.subr.mxu0 0.0
        %240 = vmatpush1.msra.mxu0 0.0
        %241 = vmatprep.subr.mxu0 0.0
        %242 = vmatpush1.msra.mxu0 0.0
        %243 = vmatprep.subr.mxu0 0.0
        %244 = vmatpush1.msra.mxu0 0.0
        %245 = vmatprep.subr.mxu0 0.0
        %246 = vmatpush1.msra.mxu0 0.0
        %247 = vmatprep.subr.mxu0 0.0
        %248 = vmatpush1.msra.mxu0 0.0
        %249 = vmatprep.subr.mxu0 0.0
        %250 = vmatpush1.msra.mxu0 0.0
        %251 = vmatprep.subr.mxu0 0.0
        %252 = vmatpush1.msra.mxu0 0.0
        %253 = vmatprep.subr.mxu0 0.0
        %254 = vmatpush1.msra.mxu0 0.0
        %255 = vmatprep.subr.mxu0 0.0
        %256 = vmatpush1.msra.mxu0 0.0
        %257 = vmatprep.subr.mxu0 0.0
        %258 = vmatpush1.msra.mxu0 0.0
        %259 = vmatprep.subr.mxu0 0.0
        %260 = vmatpush1.msra.mxu0 0.0
        %261 = vmatprep.subr.mxu0 0.0
        %262 = vmatpush1.msra.mxu0 0.0
        %263 = vmatprep.subr.mxu0 0.0
        %264 = vmatpush1.msra.mxu0 0.0
        %265 = vmatprep.subr.mxu0 0.0
        %266 = vmatpush1.msra.mxu0 0.0
        %267 = vmatprep.subr.mxu0 0.0
        %268 = vmatpush1.msra.mxu0 0.0
        %269 = vmatprep.subr.mxu0 0.0
        %270 = vmatpush1.msra.mxu0 0.0
        %271 = vmatprep.subr.mxu0 0.0
        %272 = vmatpush1.msra.mxu0 0.0
        %273 = vmatprep.subr.mxu0 0.0
        %274 = vmatpush1.msra.mxu0 0.0
        %275 = vmatprep.subr.mxu0 0.0
        %276 = vmatpush1.msra.mxu0 0.0
        %277 = vmatprep.subr.mxu0 0.0
        %278 = vmatpush1.msra.mxu0 0.0
        %279 = vmatprep.subr.mxu0 0.0
        %280 = vmatpush1.msra.mxu0 0.0
        %281 = vmatprep.subr.mxu0 0.0
        %282 = vmatpush1.msra.mxu0 0.0
        %283 = vmatprep.subr.mxu0 0.0
        %284 = vmatpush1.msra.mxu0 0.0
        %285 = vmatprep.subr.mxu0 0.0
        %286 = vmatpush1.msra.mxu0 0.0
        %287 = vmatprep.subr.mxu0 0.0
        %288 = vmatpush1.msra.mxu0 0.0
        %289 = vmatprep.subr.mxu0 0.0
        %290 = vmatpush1.msra.mxu0 0.0
        %291 = vmatprep.subr.mxu0 0.0
        %292 = vmatpush1.msra.mxu0 0.0
        %293 = vmatprep.subr.mxu0 0.0
        %294 = vmatpush1.msra.mxu0 0.0
        %295 = vmatprep.subr.mxu0 0.0
        %296 = vmatpush1.msra.mxu0 0.0
        %297 = vmatprep.mubr.f32.mxu0 0.0
        %298 = vmatmul.mubr.f32.gmra.mrb[0].mxu0 %v224
        %v299 = vpop.f32.mrb[0].mxu0
        %v300 = vadd.f32 0.0, %v299
        %v301 = vpop.f32.mrb[0].mxu0
        %302 = vmatprep.mubr.f32.mxu0 0.0
        %303 = vmatmul.mubr.f32.gmra.mrb[0].mxu0 %v227
        %v304 = vpop.f32.mrb[0].mxu0
        %v305 = vadd.f32 0.0, %v304
        %v306 = vpop.f32.mrb[0].mxu0
        %307 = vdwg.mxu0
        %v308 = vld [vmem:[%s215] sm:$0xff]
        %v309 = vld [vmem:[%s215 + $0x8] sm:$0xff]
        %v311 = vsel %vm222, %v216, 0
        %v314 = vsel %vm222, %v217, 0
        %v317 = vsel %vm229, %v305, 0
        %319 = vmatprep.subr.mxu0 0.0
        %320 = vmatpush1.msra.mxu0 %v300
        %321 = vmatprep.subr.mxu0 0.0
        %322 = vmatpush1.msra.mxu0 %v317
        %323 = vmatprep.subr.mxu0 0.0
        %324 = vmatpush1.msra.mxu0 0.0
        %325 = vmatprep.subr.mxu0 0.0
        %326 = vmatpush1.msra.mxu0 0.0
        %327 = vmatprep.subr.mxu0 0.0
        %328 = vmatpush1.msra.mxu0 0.0
        %329 = vmatprep.subr.mxu0 0.0
        %330 = vmatpush1.msra.mxu0 0.0
        %331 = vmatprep.subr.mxu0 0.0
        %332 = vmatpush1.msra.mxu0 0.0
        %333 = vmatprep.subr.mxu0 0.0
        %334 = vmatpush1.msra.mxu0 0.0
        %335 = vmatprep.subr.mxu0 0.0
        %336 = vmatpush1.msra.mxu0 0.0
        %337 = vmatprep.subr.mxu0 0.0
        %338 = vmatpush1.msra.mxu0 0.0
        %339 = vmatprep.subr.mxu0 0.0
        %340 = vmatpush1.msra.mxu0 0.0
        %341 = vmatprep.subr.mxu0 0.0
        %342 = vmatpush1.msra.mxu0 0.0
        %343 = vmatprep.subr.mxu0 0.0
        %344 = vmatpush1.msra.mxu0 0.0
        %345 = vmatprep.subr.mxu0 0.0
        %346 = vmatpush1.msra.mxu0 0.0
        %347 = vmatprep.subr.mxu0 0.0
        %348 = vmatpush1.msra.mxu0 0.0
        %349 = vmatprep.subr.mxu0 0.0
        %350 = vmatpush1.msra.mxu0 0.0
        %351 = vmatprep.subr.mxu0 0.0
        %352 = vmatpush1.msra.mxu0 0.0
        %353 = vmatprep.subr.mxu0 0.0
        %354 = vmatpush1.msra.mxu0 0.0
        %355 = vmatprep.subr.mxu0 0.0
        %356 = vmatpush1.msra.mxu0 0.0
        %357 = vmatprep.subr.mxu0 0.0
        %358 = vmatpush1.msra.mxu0 0.0
        %359 = vmatprep.subr.mxu0 0.0
        %360 = vmatpush1.msra.mxu0 0.0
        %361 = vmatprep.subr.mxu0 0.0
        %362 = vmatpush1.msra.mxu0 0.0
        %363 = vmatprep.subr.mxu0 0.0
        %364 = vmatpush1.msra.mxu0 0.0
        %365 = vmatprep.subr.mxu0 0.0
        %366 = vmatpush1.msra.mxu0 0.0
        %367 = vmatprep.subr.mxu0 0.0
        %368 = vmatpush1.msra.mxu0 0.0
        %369 = vmatprep.subr.mxu0 0.0
        %370 = vmatpush1.msra.mxu0 0.0
        %371 = vmatprep.subr.mxu0 0.0
        %372 = vmatpush1.msra.mxu0 0.0
        %373 = vmatprep.subr.mxu0 0.0
        %374 = vmatpush1.msra.mxu0 0.0
        %375 = vmatprep.subr.mxu0 0.0
        %376 = vmatpush1.msra.mxu0 0.0
        %377 = vmatprep.subr.mxu0 0.0
        %378 = vmatpush1.msra.mxu0 0.0
        %379 = vmatprep.subr.mxu0 0.0
        %380 = vmatpush1.msra.mxu0 0.0
        %381 = vmatprep.subr.mxu0 0.0
        %382 = vmatpush1.msra.mxu0 0.0
        %383 = vmatprep.mubr.f32.mxu0 0.0
        %384 = vmatmul.mubr.f32.gmra.mrb[0].mxu0 %v311
        %v385 = vpop.f32.mrb[0].mxu0
        %v386 = vadd.f32 %v308, %v385
        %v387 = vpop.f32.mrb[0].mxu0
        %388 = vmatprep.mubr.f32.mxu0 0.0
        %389 = vmatmul.mubr.f32.gmra.mrb[0].mxu0 %v314
        %v390 = vpop.f32.mrb[0].mxu0
        %v391 = vadd.f32 %v309, %v390
        %v392 = vpop.f32.mrb[0].mxu0
        %393 = vdwg.mxu0
        %v394 = vmax.f32 %v386, 0.0
        %v395 = vmax.f32 %v391, 0.0
        %vm396 = vcmask 130048
        %397 = vst.msk [vmem:[%s205] sm:$0xff] %vm396, %v394
        %398 = vst.msk [vmem:[%s205 + $0x8] sm:$0xff] %vm396, %v395
        %s399 = scalar_lea.vmem %s210, 16
        %v400 = vld [vmem:[%s399] sm:$0xff]
        %v401 = vld [vmem:[%s399 + $0x8] sm:$0x7f]
        %v403 = vsel %vm222, %v400, 0
        %v406 = vsel %vm222, %v401, 0
        %408 = vmatprep.subr.mxu0 0.0
        %409 = vmatpush1.msra.mxu0 %v218
        %410 = vmatprep.subr.mxu0 0.0
        %411 = vmatpush1.msra.mxu0 %v231
        %412 = vmatprep.subr.mxu0 0.0
        %413 = vmatpush1.msra.mxu0 0.0
        %414 = vmatprep.subr.mxu0 0.0
        %415 = vmatpush1.msra.mxu0 0.0
        %416 = vmatprep.subr.mxu0 0.0
        %417 = vmatpush1.msra.mxu0 0.0
        %418 = vmatprep.subr.mxu0 0.0
        %419 = vmatpush1.msra.mxu0 0.0
        %420 = vmatprep.subr.mxu0 0.0
        %421 = vmatpush1.msra.mxu0 0.0
        %422 = vmatprep.subr.mxu0 0.0
        %423 = vmatpush1.msra.mxu0 0.0
        %424 = vmatprep.subr.mxu0 0.0
        %425 = vmatpush1.msra.mxu0 0.0
        %426 = vmatprep.subr.mxu0 0.0
        %427 = vmatpush1.msra.mxu0 0.0
        %428 = vmatprep.subr.mxu0 0.0
        %429 = vmatpush1.msra.mxu0 0.0
        %430 = vmatprep.subr.mxu0 0.0
        %431 = vmatpush1.msra.mxu0 0.0
        %432 = vmatprep.subr.mxu0 0.0
        %433 = vmatpush1.msra.mxu0 0.0
        %434 = vmatprep.subr.mxu0 0.0
        %435 = vmatpush1.msra.mxu0 0.0
        %436 = vmatprep.subr.mxu0 0.0
        %437 = vmatpush1.msra.mxu0 0.0
        %438 = vmatprep.subr.mxu0 0.0
        %439 = vmatpush1.msra.mxu0 0.0
        %440 = vmatprep.subr.mxu0 0.0
        %441 = vmatpush1.msra.mxu0 0.0
        %442 = vmatprep.subr.mxu0 0.0
        %443 = vmatpush1.msra.mxu0 0.0
        %444 = vmatprep.subr.mxu0 0.0
        %445 = vmatpush1.msra.mxu0 0.0
        %446 = vmatprep.subr.mxu0 0.0
        %447 = vmatpush1.msra.mxu0 0.0
        %448 = vmatprep.subr.mxu0 0.0
        %449 = vmatpush1.msra.mxu0 0.0
        %450 = vmatprep.subr.mxu0 0.0
        %451 = vmatpush1.msra.mxu0 0.0
        %452 = vmatprep.subr.mxu0 0.0
        %453 = vmatpush1.msra.mxu0 0.0
        %454 = vmatprep.subr.mxu0 0.0
        %455 = vmatpush1.msra.mxu0 0.0
        %456 = vmatprep.subr.mxu0 0.0
        %457 = vmatpush1.msra.mxu0 0.0
        %458 = vmatprep.subr.mxu0 0.0
        %459 = vmatpush1.msra.mxu0 0.0
        %460 = vmatprep.subr.mxu0 0.0
        %461 = vmatpush1.msra.mxu0 0.0
        %462 = vmatprep.subr.mxu0 0.0
        %463 = vmatpush1.msra.mxu0 0.0
        %464 = vmatprep.subr.mxu0 0.0
        %465 = vmatpush1.msra.mxu0 0.0
        %466 = vmatprep.subr.mxu0 0.0
        %467 = vmatpush1.msra.mxu0 0.0
        %468 = vmatprep.subr.mxu0 0.0
        %469 = vmatpush1.msra.mxu0 0.0
        %470 = vmatprep.subr.mxu0 0.0
        %471 = vmatpush1.msra.mxu0 0.0
        %472 = vmatprep.mubr.f32.mxu0 0.0
        %473 = vmatmul.mubr.f32.gmra.mrb[0].mxu0 %v403
        %v474 = vpop.f32.mrb[0].mxu0
        %v475 = vadd.f32 0.0, %v474
        %v476 = vpop.f32.mrb[0].mxu0
        %477 = vmatprep.mubr.f32.mxu0 0.0
        %478 = vmatmul.mubr.f32.gmra.mrb[0].mxu0 %v406
        %v479 = vpop.f32.mrb[0].mxu0
        %v480 = vadd.f32 0.0, %v479
        %v481 = vpop.f32.mrb[0].mxu0
        %482 = vdwg.mxu0
        %s483 = scalar_lea.vmem %s215, 16
        %v484 = vld [vmem:[%s483] sm:$0xff]
        %v485 = vld [vmem:[%s483 + $0x8] sm:$0xff]
        %v487 = vsel %vm229, %v480, 0
        %489 = vmatprep.subr.mxu0 0.0
        %490 = vmatpush1.msra.mxu0 %v475
        %491 = vmatprep.subr.mxu0 0.0
        %492 = vmatpush1.msra.mxu0 %v487
        %493 = vmatprep.subr.mxu0 0.0
        %494 = vmatpush1.msra.mxu0 0.0
        %495 = vmatprep.subr.mxu0 0.0
        %496 = vmatpush1.msra.mxu0 0.0
        %497 = vmatprep.subr.mxu0 0.0
        %498 = vmatpush1.msra.mxu0 0.0
        %499 = vmatprep.subr.mxu0 0.0
        %500 = vmatpush1.msra.mxu0 0.0
        %501 = vmatprep.subr.mxu0 0.0
        %502 = vmatpush1.msra.mxu0 0.0
        %503 = vmatprep.subr.mxu0 0.0
        %504 = vmatpush1.msra.mxu0 0.0
        %505 = vmatprep.subr.mxu0 0.0
        %506 = vmatpush1.msra.mxu0 0.0
        %507 = vmatprep.subr.mxu0 0.0
        %508 = vmatpush1.msra.mxu0 0.0
        %509 = vmatprep.subr.mxu0 0.0
        %510 = vmatpush1.msra.mxu0 0.0
        %511 = vmatprep.subr.mxu0 0.0
        %512 = vmatpush1.msra.mxu0 0.0
        %513 = vmatprep.subr.mxu0 0.0
        %514 = vmatpush1.msra.mxu0 0.0
        %515 = vmatprep.subr.mxu0 0.0
        %516 = vmatpush1.msra.mxu0 0.0
        %517 = vmatprep.subr.mxu0 0.0
        %518 = vmatpush1.msra.mxu0 0.0
        %519 = vmatprep.subr.mxu0 0.0
        %520 = vmatpush1.msra.mxu0 0.0
        %521 = vmatprep.subr.mxu0 0.0
        %522 = vmatpush1.msra.mxu0 0.0
        %523 = vmatprep.subr.mxu0 0.0
        %524 = vmatpush1.msra.mxu0 0.0
        %525 = vmatprep.subr.mxu0 0.0
        %526 = vmatpush1.msra.mxu0 0.0
        %527 = vmatprep.subr.mxu0 0.0
        %528 = vmatpush1.msra.mxu0 0.0
        %529 = vmatprep.subr.mxu0 0.0
        %530 = vmatpush1.msra.mxu0 0.0
        %531 = vmatprep.subr.mxu0 0.0
        %532 = vmatpush1.msra.mxu0 0.0
        %533 = vmatprep.subr.mxu0 0.0
        %534 = vmatpush1.msra.mxu0 0.0
        %535 = vmatprep.subr.mxu0 0.0
        %536 = vmatpush1.msra.mxu0 0.0
        %537 = vmatprep.subr.mxu0 0.0
        %538 = vmatpush1.msra.mxu0 0.0
        %539 = vmatprep.subr.mxu0 0.0
        %540 = vmatpush1.msra.mxu0 0.0
        %541 = vmatprep.subr.mxu0 0.0
        %542 = vmatpush1.msra.mxu0 0.0
        %543 = vmatprep.subr.mxu0 0.0
        %544 = vmatpush1.msra.mxu0 0.0
        %545 = vmatprep.subr.mxu0 0.0
        %546 = vmatpush1.msra.mxu0 0.0
        %547 = vmatprep.subr.mxu0 0.0
        %548 = vmatpush1.msra.mxu0 0.0
        %549 = vmatprep.subr.mxu0 0.0
        %550 = vmatpush1.msra.mxu0 0.0
        %551 = vmatprep.subr.mxu0 0.0
        %552 = vmatpush1.msra.mxu0 0.0
        %553 = vmatprep.mubr.f32.mxu0 0.0
        %554 = vmatmul.mubr.f32.gmra.mrb[0].mxu0 %v311
        %v555 = vpop.f32.mrb[0].mxu0
        %v556 = vadd.f32 %v484, %v555
        %v557 = vpop.f32.mrb[0].mxu0
        %558 = vmatprep.mubr.f32.mxu0 0.0
        %559 = vmatmul.mubr.f32.gmra.mrb[0].mxu0 %v314
        %v560 = vpop.f32.mrb[0].mxu0
        %v561 = vadd.f32 %v485, %v560
        %v562 = vpop.f32.mrb[0].mxu0
        %563 = vdwg.mxu0
        %v564 = vmax.f32 %v556, 0.0
        %v565 = vmax.f32 %v561, 0.0
        %s566 = scalar_lea.vmem %s205, 16 [#allocation2]
        %567 = vst.msk [vmem:[%s566] sm:$0xff] %vm396, %v564
        %568 = vst.msk [vmem:[%s566 + $0x8] sm:$0xff] %vm396, %v565
        %s569 = scalar_lea.vmem %s210, 32
        %v570 = vld [vmem:[%s569] sm:$0xff]
        %v571 = vld [vmem:[%s569 + $0x8] sm:$0x7f]
        %v573 = vsel %vm222, %v570, 0
        %v576 = vsel %vm222, %v571, 0
        %578 = vmatprep.subr.mxu0 0.0
        %579 = vmatpush1.msra.mxu0 %v218
        %580 = vmatprep.subr.mxu0 0.0
        %581 = vmatpush1.msra.mxu0 %v231
        %582 = vmatprep.subr.mxu0 0.0
        %583 = vmatpush1.msra.mxu0 0.0
        %584 = vmatprep.subr.mxu0 0.0
        %585 = vmatpush1.msra.mxu0 0.0
        %586 = vmatprep.subr.mxu0 0.0
        %587 = vmatpush1.msra.mxu0 0.0
        %588 = vmatprep.subr.mxu0 0.0
        %589 = vmatpush1.msra.mxu0 0.0
        %590 = vmatprep.subr.mxu0 0.0
        %591 = vmatpush1.msra.mxu0 0.0
        %592 = vmatprep.subr.mxu0 0.0
        %593 = vmatpush1.msra.mxu0 0.0
        %594 = vmatprep.subr.mxu0 0.0
        %595 = vmatpush1.msra.mxu0 0.0
        %596 = vmatprep.subr.mxu0 0.0
        %597 = vmatpush1.msra.mxu0 0.0
        %598 = vmatprep.subr.mxu0 0.0
        %599 = vmatpush1.msra.mxu0 0.0
        %600 = vmatprep.subr.mxu0 0.0
        %601 = vmatpush1.msra.mxu0 0.0
        %602 = vmatprep.subr.mxu0 0.0
        %603 = vmatpush1.msra.mxu0 0.0
        %604 = vmatprep.subr.mxu0 0.0
        %605 = vmatpush1.msra.mxu0 0.0
        %606 = vmatprep.subr.mxu0 0.0
        %607 = vmatpush1.msra.mxu0 0.0
        %608 = vmatprep.subr.mxu0 0.0
        %609 = vmatpush1.msra.mxu0 0.0
        %610 = vmatprep.subr.mxu0 0.0
        %611 = vmatpush1.msra.mxu0 0.0
        %612 = vmatprep.subr.mxu0 0.0
        %613 = vmatpush1.msra.mxu0 0.0
        %614 = vmatprep.subr.mxu0 0.0
        %615 = vmatpush1.msra.mxu0 0.0
        %616 = vmatprep.subr.mxu0 0.0
        %617 = vmatpush1.msra.mxu0 0.0
        %618 = vmatprep.subr.mxu0 0.0
        %619 = vmatpush1.msra.mxu0 0.0
        %620 = vmatprep.subr.mxu0 0.0
        %621 = vmatpush1.msra.mxu0 0.0
        %622 = vmatprep.subr.mxu0 0.0
        %623 = vmatpush1.msra.mxu0 0.0
        %624 = vmatprep.subr.mxu0 0.0
        %625 = vmatpush1.msra.mxu0 0.0
        %626 = vmatprep.subr.mxu0 0.0
        %627 = vmatpush1.msra.mxu0 0.0
        %628 = vmatprep.subr.mxu0 0.0
        %629 = vmatpush1.msra.mxu0 0.0
        %630 = vmatprep.subr.mxu0 0.0
        %631 = vmatpush1.msra.mxu0 0.0
        %632 = vmatprep.subr.mxu0 0.0
        %633 = vmatpush1.msra.mxu0 0.0
        %634 = vmatprep.subr.mxu0 0.0
        %635 = vmatpush1.msra.mxu0 0.0
        %636 = vmatprep.subr.mxu0 0.0
        %637 = vmatpush1.msra.mxu0 0.0
        %638 = vmatprep.subr.mxu0 0.0
        %639 = vmatpush1.msra.mxu0 0.0
        %640 = vmatprep.subr.mxu0 0.0
        %641 = vmatpush1.msra.mxu0 0.0
        %642 = vmatprep.mubr.f32.mxu0 0.0
        %643 = vmatmul.mubr.f32.gmra.mrb[0].mxu0 %v573
        %v644 = vpop.f32.mrb[0].mxu0
        %v645 = vadd.f32 0.0, %v644
        %v646 = vpop.f32.mrb[0].mxu0
        %647 = vmatprep.mubr.f32.mxu0 0.0
        %648 = vmatmul.mubr.f32.gmra.mrb[0].mxu0 %v576
        %v649 = vpop.f32.mrb[0].mxu0
        %v650 = vadd.f32 0.0, %v649
        %v651 = vpop.f32.mrb[0].mxu0
        %652 = vdwg.mxu0
        %s653 = scalar_lea.vmem %s215, 32
        %v654 = vld [vmem:[%s653] sm:$0xff]
        %v655 = vld [vmem:[%s653 + $0x8] sm:$0xff]
        %v657 = vsel %vm229, %v650, 0
        %659 = vmatprep.subr.mxu0 0.0
        %660 = vmatpush1.msra.mxu0 %v645
        %661 = vmatprep.subr.mxu0 0.0
        %662 = vmatpush1.msra.mxu0 %v657
        %663 = vmatprep.subr.mxu0 0.0
        %664 = vmatpush1.msra.mxu0 0.0
        %665 = vmatprep.subr.mxu0 0.0
        %666 = vmatpush1.msra.mxu0 0.0
        %667 = vmatprep.subr.mxu0 0.0
        %668 = vmatpush1.msra.mxu0 0.0
        %669 = vmatprep.subr.mxu0 0.0
        %670 = vmatpush1.msra.mxu0 0.0
        %671 = vmatprep.subr.mxu0 0.0
        %672 = vmatpush1.msra.mxu0 0.0
        %673 = vmatprep.subr.mxu0 0.0
        %674 = vmatpush1.msra.mxu0 0.0
        %675 = vmatprep.subr.mxu0 0.0
        %676 = vmatpush1.msra.mxu0 0.0
        %677 = vmatprep.subr.mxu0 0.0
        %678 = vmatpush1.msra.mxu0 0.0
        %679 = vmatprep.subr.mxu0 0.0
        %680 = vmatpush1.msra.mxu0 0.0
        %681 = vmatprep.subr.mxu0 0.0
        %682 = vmatpush1.msra.mxu0 0.0
        %683 = vmatprep.subr.mxu0 0.0
        %684 = vmatpush1.msra.mxu0 0.0
        %685 = vmatprep.subr.mxu0 0.0
        %686 = vmatpush1.msra.mxu0 0.0
        %687 = vmatprep.subr.mxu0 0.0
        %688 = vmatpush1.msra.mxu0 0.0
        %689 = vmatprep.subr.mxu0 0.0
        %690 = vmatpush1.msra.mxu0 0.0
        %691 = vmatprep.subr.mxu0 0.0
        %692 = vmatpush1.msra.mxu0 0.0
        %693 = vmatprep.subr.mxu0 0.0
        %694 = vmatpush1.msra.mxu0 0.0
        %695 = vmatprep.subr.mxu0 0.0
        %696 = vmatpush1.msra.mxu0 0.0
        %697 = vmatprep.subr.mxu0 0.0
        %698 = vmatpush1.msra.mxu0 0.0
        %699 = vmatprep.subr.mxu0 0.0
        %700 = vmatpush1.msra.mxu0 0.0
        %701 = vmatprep.subr.mxu0 0.0
        %702 = vmatpush1.msra.mxu0 0.0
        %703 = vmatprep.subr.mxu0 0.0
        %704 = vmatpush1.msra.mxu0 0.0
        %705 = vmatprep.subr.mxu0 0.0
        %706 = vmatpush1.msra.mxu0 0.0
        %707 = vmatprep.subr.mxu0 0.0
        %708 = vmatpush1.msra.mxu0 0.0
        %709 = vmatprep.subr.mxu0 0.0
        %710 = vmatpush1.msra.mxu0 0.0
        %711 = vmatprep.subr.mxu0 0.0
        %712 = vmatpush1.msra.mxu0 0.0
        %713 = vmatprep.subr.mxu0 0.0
        %714 = vmatpush1.msra.mxu0 0.0
        %715 = vmatprep.subr.mxu0 0.0
        %716 = vmatpush1.msra.mxu0 0.0
        %717 = vmatprep.subr.mxu0 0.0
        %718 = vmatpush1.msra.mxu0 0.0
        %719 = vmatprep.subr.mxu0 0.0
        %720 = vmatpush1.msra.mxu0 0.0
        %721 = vmatprep.subr.mxu0 0.0
        %722 = vmatpush1.msra.mxu0 0.0
        %723 = vmatprep.mubr.f32.mxu0 0.0
        %724 = vmatmul.mubr.f32.gmra.mrb[0].mxu0 %v311
        %v725 = vpop.f32.mrb[0].mxu0
        %v726 = vadd.f32 %v654, %v725
        %v727 = vpop.f32.mrb[0].mxu0
        %728 = vmatprep.mubr.f32.mxu0 0.0
        %729 = vmatmul.mubr.f32.gmra.mrb[0].mxu0 %v314
        %v730 = vpop.f32.mrb[0].mxu0
        %v731 = vadd.f32 %v655, %v730
        %v732 = vpop.f32.mrb[0].mxu0
        %733 = vdwg.mxu0
        %v734 = vmax.f32 %v726, 0.0
        %v735 = vmax.f32 %v731, 0.0
        %s736 = scalar_lea.vmem %s205, 32 [#allocation2]
        %737 = vst.msk [vmem:[%s736] sm:$0xff] %vm396, %v734
        %738 = vst.msk [vmem:[%s736 + $0x8] sm:$0xff] %vm396, %v735
        %s739 = scalar_lea.vmem %s210, 48
        %v740 = vld [vmem:[%s739] sm:$0xff]
        %v741 = vld [vmem:[%s739 + $0x8] sm:$0x7f]
        %v743 = vsel %vm222, %v740, 0
        %v746 = vsel %vm222, %v741, 0
        %748 = vmatprep.subr.mxu0 0.0
        %749 = vmatpush1.msra.mxu0 %v218
        %750 = vmatprep.subr.mxu0 0.0
        %751 = vmatpush1.msra.mxu0 %v231
        %752 = vmatprep.subr.mxu0 0.0
        %753 = vmatpush1.msra.mxu0 0.0
        %754 = vmatprep.subr.mxu0 0.0
        %755 = vmatpush1.msra.mxu0 0.0
        %756 = vmatprep.subr.mxu0 0.0
        %757 = vmatpush1.msra.mxu0 0.0
        %758 = vmatprep.subr.mxu0 0.0
        %759 = vmatpush1.msra.mxu0 0.0
        %760 = vmatprep.subr.mxu0 0.0
        %761 = vmatpush1.msra.mxu0 0.0
        %762 = vmatprep.subr.mxu0 0.0
        %763 = vmatpush1.msra.mxu0 0.0
        %764 = vmatprep.subr.mxu0 0.0
        %765 = vmatpush1.msra.mxu0 0.0
        %766 = vmatprep.subr.mxu0 0.0
        %767 = vmatpush1.msra.mxu0 0.0
        %768 = vmatprep.subr.mxu0 0.0
        %769 = vmatpush1.msra.mxu0 0.0
        %770 = vmatprep.subr.mxu0 0.0
        %771 = vmatpush1.msra.mxu0 0.0
        %772 = vmatprep.subr.mxu0 0.0
        %773 = vmatpush1.msra.mxu0 0.0
        %774 = vmatprep.subr.mxu0 0.0
        %775 = vmatpush1.msra.mxu0 0.0
        %776 = vmatprep.subr.mxu0 0.0
        %777 = vmatpush1.msra.mxu0 0.0
        %778 = vmatprep.subr.mxu0 0.0
        %779 = vmatpush1.msra.mxu0 0.0
        %780 = vmatprep.subr.mxu0 0.0
        %781 = vmatpush1.msra.mxu0 0.0
        %782 = vmatprep.subr.mxu0 0.0
        %783 = vmatpush1.msra.mxu0 0.0
        %784 = vmatprep.subr.mxu0 0.0
        %785 = vmatpush1.msra.mxu0 0.0
        %786 = vmatprep.subr.mxu0 0.0
        %787 = vmatpush1.msra.mxu0 0.0
        %788 = vmatprep.subr.mxu0 0.0
        %789 = vmatpush1.msra.mxu0 0.0
        %790 = vmatprep.subr.mxu0 0.0
        %791 = vmatpush1.msra.mxu0 0.0
        %792 = vmatprep.subr.mxu0 0.0
        %793 = vmatpush1.msra.mxu0 0.0
        %794 = vmatprep.subr.mxu0 0.0
        %795 = vmatpush1.msra.mxu0 0.0
        %796 = vmatprep.subr.mxu0 0.0
        %797 = vmatpush1.msra.mxu0 0.0
        %798 = vmatprep.subr.mxu0 0.0
        %799 = vmatpush1.msra.mxu0 0.0
        %800 = vmatprep.subr.mxu0 0.0
        %801 = vmatpush1.msra.mxu0 0.0
        %802 = vmatprep.subr.mxu0 0.0
        %803 = vmatpush1.msra.mxu0 0.0
        %804 = vmatprep.subr.mxu0 0.0
        %805 = vmatpush1.msra.mxu0 0.0
        %806 = vmatprep.subr.mxu0 0.0
        %807 = vmatpush1.msra.mxu0 0.0
        %808 = vmatprep.subr.mxu0 0.0
        %809 = vmatpush1.msra.mxu0 0.0
        %810 = vmatprep.subr.mxu0 0.0
        %811 = vmatpush1.msra.mxu0 0.0
        %812 = vmatprep.mubr.f32.mxu0 0.0
        %813 = vmatmul.mubr.f32.gmra.mrb[0].mxu0 %v743
        %v814 = vpop.f32.mrb[0].mxu0
        %v815 = vadd.f32 0.0, %v814
        %v816 = vpop.f32.mrb[0].mxu0
        %817 = vmatprep.mubr.f32.mxu0 0.0
        %818 = vmatmul.mubr.f32.gmra.mrb[0].mxu0 %v746
        %v819 = vpop.f32.mrb[0].mxu0
        %v820 = vadd.f32 0.0, %v819
        %v821 = vpop.f32.mrb[0].mxu0
        %822 = vdwg.mxu0
        %s823 = scalar_lea.vmem %s215, 48
        %v824 = vld [vmem:[%s823] sm:$0xff]
        %v825 = vld [vmem:[%s823 + $0x8] sm:$0xff]
        %v827 = vsel %vm229, %v820, 0
        %829 = vmatprep.subr.mxu0 0.0
        %830 = vmatpush1.msra.mxu0 %v815
        %831 = vmatprep.subr.mxu0 0.0
        %832 = vmatpush1.msra.mxu0 %v827
        %833 = vmatprep.subr.mxu0 0.0
        %834 = vmatpush1.msra.mxu0 0.0
        %835 = vmatprep.subr.mxu0 0.0
        %836 = vmatpush1.msra.mxu0 0.0
        %837 = vmatprep.subr.mxu0 0.0
        %838 = vmatpush1.msra.mxu0 0.0
        %839 = vmatprep.subr.mxu0 0.0
        %840 = vmatpush1.msra.mxu0 0.0
        %841 = vmatprep.subr.mxu0 0.0
        %842 = vmatpush1.msra.mxu0 0.0
        %843 = vmatprep.subr.mxu0 0.0
        %844 = vmatpush1.msra.mxu0 0.0
        %845 = vmatprep.subr.mxu0 0.0
        %846 = vmatpush1.msra.mxu0 0.0
        %847 = vmatprep.subr.mxu0 0.0
        %848 = vmatpush1.msra.mxu0 0.0
        %849 = vmatprep.subr.mxu0 0.0
        %850 = vmatpush1.msra.mxu0 0.0
        %851 = vmatprep.subr.mxu0 0.0
        %852 = vmatpush1.msra.mxu0 0.0
        %853 = vmatprep.subr.mxu0 0.0
        %854 = vmatpush1.msra.mxu0 0.0
        %855 = vmatprep.subr.mxu0 0.0
        %856 = vmatpush1.msra.mxu0 0.0
        %857 = vmatprep.subr.mxu0 0.0
        %858 = vmatpush1.msra.mxu0 0.0
        %859 = vmatprep.subr.mxu0 0.0
        %860 = vmatpush1.msra.mxu0 0.0
        %861 = vmatprep.subr.mxu0 0.0
        %862 = vmatpush1.msra.mxu0 0.0
        %863 = vmatprep.subr.mxu0 0.0
        %864 = vmatpush1.msra.mxu0 0.0
        %865 = vmatprep.subr.mxu0 0.0
        %866 = vmatpush1.msra.mxu0 0.0
        %867 = vmatprep.subr.mxu0 0.0
        %868 = vmatpush1.msra.mxu0 0.0
        %869 = vmatprep.subr.mxu0 0.0
        %870 = vmatpush1.msra.mxu0 0.0
        %871 = vmatprep.subr.mxu0 0.0
        %872 = vmatpush1.msra.mxu0 0.0
        %873 = vmatprep.subr.mxu0 0.0
        %874 = vmatpush1.msra.mxu0 0.0
        %875 = vmatprep.subr.mxu0 0.0
        %876 = vmatpush1.msra.mxu0 0.0
        %877 = vmatprep.subr.mxu0 0.0
        %878 = vmatpush1.msra.mxu0 0.0
        %879 = vmatprep.subr.mxu0 0.0
        %880 = vmatpush1.msra.mxu0 0.0
        %881 = vmatprep.subr.mxu0 0.0
        %882 = vmatpush1.msra.mxu0 0.0
        %883 = vmatprep.subr.mxu0 0.0
        %884 = vmatpush1.msra.mxu0 0.0
        %885 = vmatprep.subr.mxu0 0.0
        %886 = vmatpush1.msra.mxu0 0.0
        %887 = vmatprep.subr.mxu0 0.0
        %888 = vmatpush1.msra.mxu0 0.0
        %889 = vmatprep.subr.mxu0 0.0
        %890 = vmatpush1.msra.mxu0 0.0
        %891 = vmatprep.subr.mxu0 0.0
        %892 = vmatpush1.msra.mxu0 0.0
        %893 = vmatprep.mubr.f32.mxu0 0.0
        %894 = vmatmul.mubr.f32.gmra.mrb[0].mxu0 %v311
        %v895 = vpop.f32.mrb[0].mxu0
        %v896 = vadd.f32 %v824, %v895
        %v897 = vpop.f32.mrb[0].mxu0
        %898 = vmatprep.mubr.f32.mxu0 0.0
        %899 = vmatmul.mubr.f32.gmra.mrb[0].mxu0 %v314
        %v900 = vpop.f32.mrb[0].mxu0
        %v901 = vadd.f32 %v825, %v900
        %v902 = vpop.f32.mrb[0].mxu0
        %903 = vdwg.mxu0
        %v904 = vmax.f32 %v896, 0.0
        %v905 = vmax.f32 %v901, 0.0
        %s906 = scalar_lea.vmem %s205, 48 [#allocation2]
        %907 = vst.msk [vmem:[%s906] sm:$0xff] %vm396, %v904
        %908 = vst.msk [vmem:[%s906 + $0x8] sm:$0xff] %vm396, %v905
        %s909 = sand.u32 %s120, 1
        %s910 = scalar_lea.sflag [#allocation3], %s909
        %s911 = sand.u32 %s120, 1
        %s912 = smul.addr %s911, 64
        %s913 = scalar_lea.vmem [#allocation2], %s912
        // Predicated region
        $region37: #{gat_forward.9} parent=35 // pred_check
          %p914 = pneg %p130
        $region38: #{gat_forward.9} parent=35 // pred_check_branch
          %916 = sbr.rel (%p914) target = $region40
        $region39: #{gat_forward.9} parent=35 // pred_region
          %s918 = ssub.s32 1024, 1024
          %919 = vsyncadd %s910, %s918
          %s920 = smul.addr %s18, 8
          %s921 = smul.addr %s920, 128
          %s922 = scalar_lea.hbm %s4, %s921
          %s923 = sshll.u32 %s913, 4
          %s924 = int_to_ptr.vmem [resolvable:$true] %s923
          %929 = dma.vmem_to_hbm [thread:$0]  %s924, 1024, %s922, %s910, 128, 128, 8
        $region40: #{gat_forward.9} parent=35 // pred_fallthru
          _
      $region36: #{gat_forward.9} parent=5 // pred_fallthru
        _
      %p930 = scmp.le.s32.totalorder 2, %s13
      // Predicated region
      $region41: #{gat_forward.9} parent=5 // pred_check
        %p931 = pneg %p930
      $region42: #{gat_forward.9} parent=5 // pred_check_branch
        %933 = sbr.rel (%p931) target = $region44
      $region43: #{gat_forward.9} parent=5 // pred_region
        %s934 = ssub.s32 %s13, 2
        // Predicated region
        $region45: #{gat_forward.9} parent=43 // pred_check
          %p935 = pneg %p136
        $region46: #{gat_forward.9} parent=43 // pred_check_branch
          %937 = sbr.rel (%p935) target = $region48
        $region47: #{gat_forward.9} parent=43 // pred_region
          %s938 = sand.u32 %s121, 1
          %s939 = scalar_lea.sflag [#allocation3], %s938
          %s940 = sand.u32 %s121, 1
          %s941 = smul.addr %s940, 64
          %s942 = scalar_lea.vmem [#allocation2], %s941
          %943 = dma.done %s939, 1024
        $region48: #{gat_forward.9} parent=43 // pred_fallthru
          _
      $region44: #{gat_forward.9} parent=5 // pred_fallthru
        _
    $region6: #{gat_forward.9} parent=1 // loop_footer
      %s17 = sadd.s32 1, %s13
    $region7: #{gat_forward.9} parent=1 // loop_footer_branch
      %12 = sbr.rel target = $region3
    $region8: #{gat_forward.9} parent=1 // loop_exit
      _
    %944 = vsyncpa [#allocation3], 1
    %s945 = scalar_lea.sflag [#allocation3], 1
    %946 = vsyncpa %s945, 1

</llo_original>
